<compile_context>
chip_gen: v7x
topology: tpu7x:2x2x1
jax: 0.10.0
libtpu: 0.0.40
codegen_flags: <defaults>
</compile_context>

<pallas_src>
import functools

import jax
import jax.numpy as jnp
from jax.experimental import pallas as pl
from jax.experimental.pallas import tpu as pltpu

_OUT_LANES = 128          # lane-dense output row -> one unmasked vst per grid step
_B_TILE_CAP = 4           # vreg-pressure cap (packed array keeps ~5-6 live copies)


def _bitonic_sort_lanes(a, idx, n):
    """Ascending bitonic sort of each row of `a` (R, n) along the lane axis.

    `n` must be a power of two. `idx` is a lane-index iota of a.shape, built once by
    the caller. Compare-exchange partners are fetched with two independent
    pltpu.roll's (they can co-issue on the 2-3 XLU slots); the wrap-around values are
    never selected. The mask arithmetic depends only on `idx` and the compile-time
    stage constants (j, k), so it stays off the XLU critical chain and fills
    otherwise-idle VALU slots.
    """
    k = 2
    while k <= n:
        j = k // 2
        while j >= 1:
            partner_up = pltpu.roll(a, shift=n - j, axis=1)  # a[i + j]
            partner_dn = pltpu.roll(a, shift=j, axis=1)      # a[i - j]
            is_lower = (idx & j) == 0                        # i is the lower index of its pair
            ascending = (idx & k) == 0
            take_min = ascending == is_lower
            partner = jnp.where(is_lower, partner_up, partner_dn)
            a = jnp.where(take_min, jnp.minimum(a, partner), jnp.maximum(a, partner))
            j //= 2
        k *= 2
    return a


def _swd_kernel(cos_ref, sin_ref, x_ref, y_ref, out_ref, *, n_points, n_slices, b_tile):
    # cos/sin arrive pre-broadcast as (S, N) rows (row s is cos/sin(theta_s) in every
    # lane); constant index_map -> fetched once, no per-step lane slice/broadcast.
    cos_b = cos_ref[...]                       # (S, N)
    sin_b = sin_ref[...]                       # (S, N)

    xv = x_ref[...]                            # (2, b_tile, N) coordinate-major coords
    yv = y_ref[...]                            # (2, b_tile, N)

    # Per-pair projections as full (S, N) (8-sublane-aligned) slabs, packed pair-major
    # [x pair 0 .. x pair b_tile-1, y pair 0 .. y pair b_tile-1] so the concat, the
    # half split and the epilogue slices all land exactly on vreg tile boundaries.
    # Exact f32 VPU mul-adds (the MXU path would round through bf16 and diverge).
    rows = []
    for cv in (xv, yv):
        for b in range(b_tile):
            c0 = cv[0, b:b + 1, :]             # (1, N) x-coordinates of pair b
            c1 = cv[1, b:b + 1, :]             # (1, N) y-coordinates of pair b
            rows.append(cos_b * c0 + sin_b * c1)               # (S, N)
    packed = jnp.concatenate(rows, axis=0)                     # (2*b_tile*S, N)

    # ONE bitonic pass sorts every row (all folded pairs, both clouds) along lanes,
    # amortizing the serial roll chain over the whole fold.
    idx = jax.lax.broadcasted_iota(jnp.int32, packed.shape, 1)
    packed = _bitonic_sort_lanes(packed, idx, n_points)

    half = b_tile * n_slices
    d = packed[:half, :] - packed[half:, :]    # sorted x-proj minus sorted y-proj
    d2 = d * d

    # Fused per-pair epilogue: one (S, N)-slab reduction per pair, scaled once by 1/N,
    # assembled into a single lane-dense (1, 128) row (unmasked store; unused lanes 0).
    lane = jax.lax.broadcasted_iota(jnp.int32, (1, _OUT_LANES), 1)
    row = jnp.zeros((1, _OUT_LANES), jnp.float32)
    for b in range(b_tile):
        slab = d2[b * n_slices:(b + 1) * n_slices, :]          # (S, N), tile-aligned
        t_b = jnp.sum(jnp.sum(slab, axis=1, keepdims=True), axis=0, keepdims=True)  # (1,1)
        row = jnp.where(lane == b, t_b, row)
    out_ref[...] = row * (1.0 / n_points)


@functools.partial(jax.jit, static_argnames=("b_tile",))
def _sliced_ws_loss_batched(x, y, proj, *, b_tile):
    """x, y: (B, N, 2) f32; proj: (S, 2) f32 rows of [cos, sin]. Returns (B,) losses."""
    b, n, _ = x.shape
    s = proj.shape[0]
    s_pad = (s + 7) // 8 * 8                   # zero-padded slices contribute exactly 0
    num_steps = b // b_tile

    # pre-broadcast projection constants (computed once in this jit, fused with the
    # pallas_call; fetched once by the kernel thanks to the constant index_map).
    cos_b = jnp.pad(jnp.broadcast_to(proj[:, 0:1], (s, n)), ((0, s_pad - s), (0, 0)))
    sin_b = jnp.pad(jnp.broadcast_to(proj[:, 1:2], (s, n)), ((0, s_pad - s), (0, 0)))

    # coordinate-major, pre-grouped per grid step: (num_steps, 2, b_tile, N) so the
    # kernel block's minor dims equal the array's minor dims (tile-legal, no relayout).
    xt = x.reshape(num_steps, b_tile, n, 2).transpose(0, 3, 1, 2)
    yt = y.reshape(num_steps, b_tile, n, 2).transpose(0, 3, 1, 2)

    out = pl.pallas_call(
        functools.partial(_swd_kernel, n_points=n, n_slices=s_pad, b_tile=b_tile),
        out_shape=jax.ShapeDtypeStruct((num_steps, 1, _OUT_LANES), jnp.float32),
        grid=(num_steps,),
        in_specs=[
            pl.BlockSpec((s_pad, n), lambda i: (0, 0)),               # cos rows (shared)
            pl.BlockSpec((s_pad, n), lambda i: (0, 0)),               # sin rows (shared)
            pl.BlockSpec((None, 2, b_tile, n), lambda i: (i, 0, 0, 0)),  # x pairs of step i
            pl.BlockSpec((None, 2, b_tile, n), lambda i: (i, 0, 0, 0)),  # y pairs of step i
        ],
        out_specs=pl.BlockSpec((None, 1, _OUT_LANES), lambda i: (i, 0, 0)),
        compiler_params=pltpu.CompilerParams(
            dimension_semantics=("parallel",),   # >= 2 steps when B >= 2 -> both v7x TCs
        ),
    )(cos_b, sin_b, xt, yt)
    return out[:, 0, :b_tile].reshape(b)


def _pick_b_tile(b):
    """Pairs folded per grid step: capped by vreg pressure (4; 2 on v5e, which has a
    single vector-store slot so spills are costly) and chosen so the grid keeps at
    least two parallel steps whenever B >= 2 (v7x has two TensorCores)."""
    cap = _B_TILE_CAP
    try:
        kind = jax.devices()[0].device_kind.lower()
        if "v5e" in kind or "v5 lite" in kind or "v5lite" in kind:
            cap = 2
    except Exception:
        pass
    if b <= 1:
        return 1
    limit = max(1, min(cap, b // 2))
    for t in range(limit, 0, -1):
        if b % t == 0:
            return t
    return 1


def sliced_ws_loss_2d(x, y, proj):
    """Sliced Wasserstein loss for 2D point clouds.

    x, y: (B, N, 2) point clouds (B = 1 matches the PyTorch module, which squeezes
    dim 0); proj: (n_slices, 2) rows of [cos(theta), sin(theta)].
    Returns a scalar for B == 1 (module semantics), else a (B,) loss vector.
    """
    assert x.ndim == 3 and x.shape[-1] == 2 and x.shape == y.shape
    b, n, _ = x.shape
    assert n & (n - 1) == 0 and n >= 2, "bitonic sort requires a power-of-two point count"

    b_tile = _pick_b_tile(b)
    losses = _sliced_ws_loss_batched(
        x.astype(jnp.float32), y.astype(jnp.float32), proj.astype(jnp.float32),
        b_tile=b_tile)
    return losses[0] if b == 1 else losses


def _reference(x, y, proj):
    """Pure-JAX reference (same f32 elementwise projection + jnp.sort)."""
    xp = proj[:, 0:1][None] * x[..., 0][:, None, :] + proj[:, 1:2][None] * x[..., 1][:, None, :]
    yp = proj[:, 0:1][None] * y[..., 0][:, None, :] + proj[:, 1:2][None] * y[..., 1][:, None, :]
    xp = jnp.sort(xp, axis=-1)
    yp = jnp.sort(yp, axis=-1)
    return jnp.sum(jnp.mean((xp - yp) ** 2, axis=-1), axis=-1)   # (B,)


if __name__ == "__main__":
    key = jax.random.PRNGKey(0)
    kx, ky, ka = jax.random.split(key, 3)

    n_slices = 8
    n_points = 128

    # module semantics: a single (1, N, 2) pair of point clouds -> scalar loss
    x = jax.random.normal(kx, (1, n_points, 2), dtype=jnp.float32)
    y = jax.random.normal(ky, (1, n_points, 2), dtype=jnp.float32)

    # TODO(synk): the module draws torch.rand(n_slices) inside forward(); the per-call
    # RNG is drawn here with jax.random (host side) and passed in as the projections.
    angles = jax.random.uniform(ka, (n_slices,), dtype=jnp.float32) * 2.0 * jnp.pi
    proj = jnp.stack([jnp.cos(angles), jnp.sin(angles)], axis=1)   # (S, 2)

    loss = jax.block_until_ready(sliced_ws_loss_2d(x, y, proj))
    ref = _reference(x, y, proj)[0]
    assert jnp.allclose(loss, ref, rtol=1e-5, atol=1e-6), (loss, ref)

    # batched path: 4 pairs -> 2 pairs folded per grid step, 2 "parallel" grid steps
    kb1, kb2 = jax.random.split(jax.random.PRNGKey(1))
    xb = jax.random.normal(kb1, (4, n_points, 2), dtype=jnp.float32)
    yb = jax.random.normal(kb2, (4, n_points, 2), dtype=jnp.float32)
    losses = jax.block_until_ready(sliced_ws_loss_2d(xb, yb, proj))
    refs = _reference(xb, yb, proj)
    assert jnp.allclose(losses, refs, rtol=1e-5, atol=1e-6), (losses, refs)

    # non-multiple-of-8 slice count exercises the zero-padded cos/sin rows
    angles5 = jax.random.uniform(jax.random.PRNGKey(2), (5,), dtype=jnp.float32) * 2.0 * jnp.pi
    proj5 = jnp.stack([jnp.cos(angles5), jnp.sin(angles5)], axis=1)
    loss5 = jax.block_until_ready(sliced_ws_loss_2d(x, y, proj5))
    ref5 = _reference(x, y, proj5)[0]
    assert jnp.allclose(loss5, ref5, rtol=1e-5, atol=1e-6), (loss5, ref5)

    print("KERNEL_OK")
</pallas_src>

<mosaic_0001>
module attributes {stable_mosaic.version = 11 : i64} {
  func.func @_swd_kernel(%arg0: i32, %arg1: memref<8x128xf32, #tpu.memory_space<vmem>>, %arg2: memref<8x128xf32, #tpu.memory_space<vmem>>, %arg3: memref<1x2x1x128xf32, #tpu.memory_space<vmem>>, %arg4: memref<1x2x1x128xf32, #tpu.memory_space<vmem>>, %arg5: memref<1x1x128xf32, #tpu.memory_space<vmem>>) attributes {dimension_semantics = [#tpu.dimension_semantics<parallel>], iteration_bounds = array<i64: 1>, scalar_prefetch = 0 : i64, scratch_operands = 0 : i64, tpu.core_type = #tpu.core_type<tc>, window_params = [{pipeline_mode = #tpu.pipeline_mode<synchronous>, transform_indices = @transform_0, window_bounds = array<i64: 8, 128>}, {pipeline_mode = #tpu.pipeline_mode<synchronous>, transform_indices = @transform_1, window_bounds = array<i64: 8, 128>}, {transform_indices = @transform_2, window_bounds = array<i64: 1, 2, 1, 128>}, {transform_indices = @transform_3, window_bounds = array<i64: 1, 2, 1, 128>}, {transform_indices = @transform_4, window_bounds = array<i64: 1, 1, 128>}]} {
    %c0 = arith.constant 0 : index
    %c0_0 = arith.constant 0 : index
    %0 = vector.load %arg1[%c0, %c0_0] : memref<8x128xf32, #tpu.memory_space<vmem>>, vector<8x128xf32>
    %c0_1 = arith.constant 0 : index
    %c0_2 = arith.constant 0 : index
    %1 = vector.load %arg2[%c0_1, %c0_2] : memref<8x128xf32, #tpu.memory_space<vmem>>, vector<8x128xf32>
    %c0_3 = arith.constant 0 : index
    %c0_4 = arith.constant 0 : index
    %c0_5 = arith.constant 0 : index
    %c0_6 = arith.constant 0 : index
    %2 = vector.load %arg3[%c0_3, %c0_4, %c0_5, %c0_6] : memref<1x2x1x128xf32, #tpu.memory_space<vmem>>, vector<1x2x1x128xf32>
    %3 = vector.shape_cast %2 : vector<1x2x1x128xf32> to vector<2x1x128xf32>
    %c0_7 = arith.constant 0 : index
    %c0_8 = arith.constant 0 : index
    %c0_9 = arith.constant 0 : index
    %c0_10 = arith.constant 0 : index
    %4 = vector.load %arg4[%c0_7, %c0_8, %c0_9, %c0_10] : memref<1x2x1x128xf32, #tpu.memory_space<vmem>>, vector<1x2x1x128xf32>
    %5 = vector.shape_cast %4 : vector<1x2x1x128xf32> to vector<2x1x128xf32>
    %6 = vector.extract_strided_slice %3 {offsets = [0, 0, 0], sizes = [1, 1, 128], strides = [1, 1, 1]} : vector<2x1x128xf32> to vector<1x1x128xf32>
    %7 = vector.shape_cast %6 : vector<1x1x128xf32> to vector<1x128xf32>
    %8 = vector.extract_strided_slice %3 {offsets = [1, 0, 0], sizes = [1, 1, 128], strides = [1, 1, 1]} : vector<2x1x128xf32> to vector<1x1x128xf32>
    %9 = vector.shape_cast %8 : vector<1x1x128xf32> to vector<1x128xf32>
    %10 = vector.broadcast %7 : vector<1x128xf32> to vector<8x128xf32>
    %11 = arith.mulf %0, %10 : vector<8x128xf32>
    %12 = vector.broadcast %9 : vector<1x128xf32> to vector<8x128xf32>
    %13 = arith.mulf %1, %12 : vector<8x128xf32>
    %14 = arith.addf %11, %13 : vector<8x128xf32>
    %15 = vector.extract_strided_slice %5 {offsets = [0, 0, 0], sizes = [1, 1, 128], strides = [1, 1, 1]} : vector<2x1x128xf32> to vector<1x1x128xf32>
    %16 = vector.shape_cast %15 : vector<1x1x128xf32> to vector<1x128xf32>
    %17 = vector.extract_strided_slice %5 {offsets = [1, 0, 0], sizes = [1, 1, 128], strides = [1, 1, 1]} : vector<2x1x128xf32> to vector<1x1x128xf32>
    %18 = vector.shape_cast %17 : vector<1x1x128xf32> to vector<1x128xf32>
    %19 = vector.broadcast %16 : vector<1x128xf32> to vector<8x128xf32>
    %20 = arith.mulf %0, %19 : vector<8x128xf32>
    %21 = vector.broadcast %18 : vector<1x128xf32> to vector<8x128xf32>
    %22 = arith.mulf %1, %21 : vector<8x128xf32>
    %23 = arith.addf %20, %22 : vector<8x128xf32>
    %24 = tpu.concatenate %14, %23 in 0 : vector<8x128xf32>, vector<8x128xf32> -> vector<16x128xf32>
    %25 = tpu.iota {dimensions = array<i32: 1>} : vector<16x128xi32>
    %c127_i32 = arith.constant 127 : i32
    %26 = tpu.dynamic_rotate %24 by %c127_i32 dim 1 : vector<16x128xf32>, i32 -> vector<16x128xf32>
    %c1_i32 = arith.constant 1 : i32
    %27 = tpu.dynamic_rotate %24 by %c1_i32 dim 1 : vector<16x128xf32>, i32 -> vector<16x128xf32>
    %c1_i32_11 = arith.constant 1 : i32
    %28 = vector.broadcast %c1_i32_11 : i32 to vector<16x128xi32>
    %29 = arith.andi %25, %28 : vector<16x128xi32>
    %c0_i32 = arith.constant 0 : i32
    %30 = vector.broadcast %c0_i32 : i32 to vector<16x128xi32>
    %31 = arith.cmpi eq, %29, %30 : vector<16x128xi32>
    %c2_i32 = arith.constant 2 : i32
    %32 = vector.broadcast %c2_i32 : i32 to vector<16x128xi32>
    %33 = arith.andi %25, %32 : vector<16x128xi32>
    %c0_i32_12 = arith.constant 0 : i32
    %34 = vector.broadcast %c0_i32_12 : i32 to vector<16x128xi32>
    %35 = arith.cmpi eq, %33, %34 : vector<16x128xi32>
    %36 = arith.xori %35, %31 : vector<16x128xi1>
    %cst = arith.constant dense<true> : vector<16x128xi1>
    %37 = arith.xori %36, %cst : vector<16x128xi1>
    %38 = arith.select %31, %26, %27 : vector<16x128xi1>, vector<16x128xf32>
    %39 = arith.minimumf %24, %38 : vector<16x128xf32>
    %40 = arith.maximumf %24, %38 : vector<16x128xf32>
    %41 = arith.select %37, %39, %40 : vector<16x128xi1>, vector<16x128xf32>
    %c126_i32 = arith.constant 126 : i32
    %42 = tpu.dynamic_rotate %41 by %c126_i32 dim 1 : vector<16x128xf32>, i32 -> vector<16x128xf32>
    %c2_i32_13 = arith.constant 2 : i32
    %43 = tpu.dynamic_rotate %41 by %c2_i32_13 dim 1 : vector<16x128xf32>, i32 -> vector<16x128xf32>
    %c2_i32_14 = arith.constant 2 : i32
    %44 = vector.broadcast %c2_i32_14 : i32 to vector<16x128xi32>
    %45 = arith.andi %25, %44 : vector<16x128xi32>
    %c0_i32_15 = arith.constant 0 : i32
    %46 = vector.broadcast %c0_i32_15 : i32 to vector<16x128xi32>
    %47 = arith.cmpi eq, %45, %46 : vector<16x128xi32>
    %c4_i32 = arith.constant 4 : i32
    %48 = vector.broadcast %c4_i32 : i32 to vector<16x128xi32>
    %49 = arith.andi %25, %48 : vector<16x128xi32>
    %c0_i32_16 = arith.constant 0 : i32
    %50 = vector.broadcast %c0_i32_16 : i32 to vector<16x128xi32>
    %51 = arith.cmpi eq, %49, %50 : vector<16x128xi32>
    %52 = arith.xori %51, %47 : vector<16x128xi1>
    %cst_17 = arith.constant dense<true> : vector<16x128xi1>
    %53 = arith.xori %52, %cst_17 : vector<16x128xi1>
    %54 = arith.select %47, %42, %43 : vector<16x128xi1>, vector<16x128xf32>
    %55 = arith.minimumf %41, %54 : vector<16x128xf32>
    %56 = arith.maximumf %41, %54 : vector<16x128xf32>
    %57 = arith.select %53, %55, %56 : vector<16x128xi1>, vector<16x128xf32>
    %c127_i32_18 = arith.constant 127 : i32
    %58 = tpu.dynamic_rotate %57 by %c127_i32_18 dim 1 : vector<16x128xf32>, i32 -> vector<16x128xf32>
    %c1_i32_19 = arith.constant 1 : i32
    %59 = tpu.dynamic_rotate %57 by %c1_i32_19 dim 1 : vector<16x128xf32>, i32 -> vector<16x128xf32>
    %c1_i32_20 = arith.constant 1 : i32
    %60 = vector.broadcast %c1_i32_20 : i32 to vector<16x128xi32>
    %61 = arith.andi %25, %60 : vector<16x128xi32>
    %c0_i32_21 = arith.constant 0 : i32
    %62 = vector.broadcast %c0_i32_21 : i32 to vector<16x128xi32>
    %63 = arith.cmpi eq, %61, %62 : vector<16x128xi32>
    %c4_i32_22 = arith.constant 4 : i32
    %64 = vector.broadcast %c4_i32_22 : i32 to vector<16x128xi32>
    %65 = arith.andi %25, %64 : vector<16x128xi32>
    %c0_i32_23 = arith.constant 0 : i32
    %66 = vector.broadcast %c0_i32_23 : i32 to vector<16x128xi32>
    %67 = arith.cmpi eq, %65, %66 : vector<16x128xi32>
    %68 = arith.xori %67, %63 : vector<16x128xi1>
    %cst_24 = arith.constant dense<true> : vector<16x128xi1>
    %69 = arith.xori %68, %cst_24 : vector<16x128xi1>
    %70 = arith.select %63, %58, %59 : vector<16x128xi1>, vector<16x128xf32>
    %71 = arith.minimumf %57, %70 : vector<16x128xf32>
    %72 = arith.maximumf %57, %70 : vector<16x128xf32>
    %73 = arith.select %69, %71, %72 : vector<16x128xi1>, vector<16x128xf32>
    %c124_i32 = arith.constant 124 : i32
    %74 = tpu.dynamic_rotate %73 by %c124_i32 dim 1 : vector<16x128xf32>, i32 -> vector<16x128xf32>
    %c4_i32_25 = arith.constant 4 : i32
    %75 = tpu.dynamic_rotate %73 by %c4_i32_25 dim 1 : vector<16x128xf32>, i32 -> vector<16x128xf32>
    %c4_i32_26 = arith.constant 4 : i32
    %76 = vector.broadcast %c4_i32_26 : i32 to vector<16x128xi32>
    %77 = arith.andi %25, %76 : vector<16x128xi32>
    %c0_i32_27 = arith.constant 0 : i32
    %78 = vector.broadcast %c0_i32_27 : i32 to vector<16x128xi32>
    %79 = arith.cmpi eq, %77, %78 : vector<16x128xi32>
    %c8_i32 = arith.constant 8 : i32
    %80 = vector.broadcast %c8_i32 : i32 to vector<16x128xi32>
    %81 = arith.andi %25, %80 : vector<16x128xi32>
    %c0_i32_28 = arith.constant 0 : i32
    %82 = vector.broadcast %c0_i32_28 : i32 to vector<16x128xi32>
    %83 = arith.cmpi eq, %81, %82 : vector<16x128xi32>
    %84 = arith.xori %83, %79 : vector<16x128xi1>
    %cst_29 = arith.constant dense<true> : vector<16x128xi1>
    %85 = arith.xori %84, %cst_29 : vector<16x128xi1>
    %86 = arith.select %79, %74, %75 : vector<16x128xi1>, vector<16x128xf32>
    %87 = arith.minimumf %73, %86 : vector<16x128xf32>
    %88 = arith.maximumf %73, %86 : vector<16x128xf32>
    %89 = arith.select %85, %87, %88 : vector<16x128xi1>, vector<16x128xf32>
    %c126_i32_30 = arith.constant 126 : i32
    %90 = tpu.dynamic_rotate %89 by %c126_i32_30 dim 1 : vector<16x128xf32>, i32 -> vector<16x128xf32>
    %c2_i32_31 = arith.constant 2 : i32
    %91 = tpu.dynamic_rotate %89 by %c2_i32_31 dim 1 : vector<16x128xf32>, i32 -> vector<16x128xf32>
    %c2_i32_32 = arith.constant 2 : i32
    %92 = vector.broadcast %c2_i32_32 : i32 to vector<16x128xi32>
    %93 = arith.andi %25, %92 : vector<16x128xi32>
    %c0_i32_33 = arith.constant 0 : i32
    %94 = vector.broadcast %c0_i32_33 : i32 to vector<16x128xi32>
    %95 = arith.cmpi eq, %93, %94 : vector<16x128xi32>
    %c8_i32_34 = arith.constant 8 : i32
    %96 = vector.broadcast %c8_i32_34 : i32 to vector<16x128xi32>
    %97 = arith.andi %25, %96 : vector<16x128xi32>
    %c0_i32_35 = arith.constant 0 : i32
    %98 = vector.broadcast %c0_i32_35 : i32 to vector<16x128xi32>
    %99 = arith.cmpi eq, %97, %98 : vector<16x128xi32>
    %100 = arith.xori %99, %95 : vector<16x128xi1>
    %cst_36 = arith.constant dense<true> : vector<16x128xi1>
    %101 = arith.xori %100, %cst_36 : vector<16x128xi1>
    %102 = arith.select %95, %90, %91 : vector<16x128xi1>, vector<16x128xf32>
    %103 = arith.minimumf %89, %102 : vector<16x128xf32>
    %104 = arith.maximumf %89, %102 : vector<16x128xf32>
    %105 = arith.select %101, %103, %104 : vector<16x128xi1>, vector<16x128xf32>
    %c127_i32_37 = arith.constant 127 : i32
    %106 = tpu.dynamic_rotate %105 by %c127_i32_37 dim 1 : vector<16x128xf32>, i32 -> vector<16x128xf32>
    %c1_i32_38 = arith.constant 1 : i32
    %107 = tpu.dynamic_rotate %105 by %c1_i32_38 dim 1 : vector<16x128xf32>, i32 -> vector<16x128xf32>
    %c1_i32_39 = arith.constant 1 : i32
    %108 = vector.broadcast %c1_i32_39 : i32 to vector<16x128xi32>
    %109 = arith.andi %25, %108 : vector<16x128xi32>
    %c0_i32_40 = arith.constant 0 : i32
    %110 = vector.broadcast %c0_i32_40 : i32 to vector<16x128xi32>
    %111 = arith.cmpi eq, %109, %110 : vector<16x128xi32>
    %c8_i32_41 = arith.constant 8 : i32
    %112 = vector.broadcast %c8_i32_41 : i32 to vector<16x128xi32>
    %113 = arith.andi %25, %112 : vector<16x128xi32>
    %c0_i32_42 = arith.constant 0 : i32
    %114 = vector.broadcast %c0_i32_42 : i32 to vector<16x128xi32>
    %115 = arith.cmpi eq, %113, %114 : vector<16x128xi32>
    %116 = arith.xori %115, %111 : vector<16x128xi1>
    %cst_43 = arith.constant dense<true> : vector<16x128xi1>
    %117 = arith.xori %116, %cst_43 : vector<16x128xi1>
    %118 = arith.select %111, %106, %107 : vector<16x128xi1>, vector<16x128xf32>
    %119 = arith.minimumf %105, %118 : vector<16x128xf32>
    %120 = arith.maximumf %105, %118 : vector<16x128xf32>
    %121 = arith.select %117, %119, %120 : vector<16x128xi1>, vector<16x128xf32>
    %c120_i32 = arith.constant 120 : i32
    %122 = tpu.dynamic_rotate %121 by %c120_i32 dim 1 : vector<16x128xf32>, i32 -> vector<16x128xf32>
    %c8_i32_44 = arith.constant 8 : i32
    %123 = tpu.dynamic_rotate %121 by %c8_i32_44 dim 1 : vector<16x128xf32>, i32 -> vector<16x128xf32>
    %c8_i32_45 = arith.constant 8 : i32
    %124 = vector.broadcast %c8_i32_45 : i32 to vector<16x128xi32>
    %125 = arith.andi %25, %124 : vector<16x128xi32>
    %c0_i32_46 = arith.constant 0 : i32
    %126 = vector.broadcast %c0_i32_46 : i32 to vector<16x128xi32>
    %127 = arith.cmpi eq, %125, %126 : vector<16x128xi32>
    %c16_i32 = arith.constant 16 : i32
    %128 = vector.broadcast %c16_i32 : i32 to vector<16x128xi32>
    %129 = arith.andi %25, %128 : vector<16x128xi32>
    %c0_i32_47 = arith.constant 0 : i32
    %130 = vector.broadcast %c0_i32_47 : i32 to vector<16x128xi32>
    %131 = arith.cmpi eq, %129, %130 : vector<16x128xi32>
    %132 = arith.xori %131, %127 : vector<16x128xi1>
    %cst_48 = arith.constant dense<true> : vector<16x128xi1>
    %133 = arith.xori %132, %cst_48 : vector<16x128xi1>
    %134 = arith.select %127, %122, %123 : vector<16x128xi1>, vector<16x128xf32>
    %135 = arith.minimumf %121, %134 : vector<16x128xf32>
    %136 = arith.maximumf %121, %134 : vector<16x128xf32>
    %137 = arith.select %133, %135, %136 : vector<16x128xi1>, vector<16x128xf32>
    %c124_i32_49 = arith.constant 124 : i32
    %138 = tpu.dynamic_rotate %137 by %c124_i32_49 dim 1 : vector<16x128xf32>, i32 -> vector<16x128xf32>
    %c4_i32_50 = arith.constant 4 : i32
    %139 = tpu.dynamic_rotate %137 by %c4_i32_50 dim 1 : vector<16x128xf32>, i32 -> vector<16x128xf32>
    %c4_i32_51 = arith.constant 4 : i32
    %140 = vector.broadcast %c4_i32_51 : i32 to vector<16x128xi32>
    %141 = arith.andi %25, %140 : vector<16x128xi32>
    %c0_i32_52 = arith.constant 0 : i32
    %142 = vector.broadcast %c0_i32_52 : i32 to vector<16x128xi32>
    %143 = arith.cmpi eq, %141, %142 : vector<16x128xi32>
    %c16_i32_53 = arith.constant 16 : i32
    %144 = vector.broadcast %c16_i32_53 : i32 to vector<16x128xi32>
    %145 = arith.andi %25, %144 : vector<16x128xi32>
    %c0_i32_54 = arith.constant 0 : i32
    %146 = vector.broadcast %c0_i32_54 : i32 to vector<16x128xi32>
    %147 = arith.cmpi eq, %145, %146 : vector<16x128xi32>
    %148 = arith.xori %147, %143 : vector<16x128xi1>
    %cst_55 = arith.constant dense<true> : vector<16x128xi1>
    %149 = arith.xori %148, %cst_55 : vector<16x128xi1>
    %150 = arith.select %143, %138, %139 : vector<16x128xi1>, vector<16x128xf32>
    %151 = arith.minimumf %137, %150 : vector<16x128xf32>
    %152 = arith.maximumf %137, %150 : vector<16x128xf32>
    %153 = arith.select %149, %151, %152 : vector<16x128xi1>, vector<16x128xf32>
    %c126_i32_56 = arith.constant 126 : i32
    %154 = tpu.dynamic_rotate %153 by %c126_i32_56 dim 1 : vector<16x128xf32>, i32 -> vector<16x128xf32>
    %c2_i32_57 = arith.constant 2 : i32
    %155 = tpu.dynamic_rotate %153 by %c2_i32_57 dim 1 : vector<16x128xf32>, i32 -> vector<16x128xf32>
    %c2_i32_58 = arith.constant 2 : i32
    %156 = vector.broadcast %c2_i32_58 : i32 to vector<16x128xi32>
    %157 = arith.andi %25, %156 : vector<16x128xi32>
    %c0_i32_59 = arith.constant 0 : i32
    %158 = vector.broadcast %c0_i32_59 : i32 to vector<16x128xi32>
    %159 = arith.cmpi eq, %157, %158 : vector<16x128xi32>
    %c16_i32_60 = arith.constant 16 : i32
    %160 = vector.broadcast %c16_i32_60 : i32 to vector<16x128xi32>
    %161 = arith.andi %25, %160 : vector<16x128xi32>
    %c0_i32_61 = arith.constant 0 : i32
    %162 = vector.broadcast %c0_i32_61 : i32 to vector<16x128xi32>
    %163 = arith.cmpi eq, %161, %162 : vector<16x128xi32>
    %164 = arith.xori %163, %159 : vector<16x128xi1>
    %cst_62 = arith.constant dense<true> : vector<16x128xi1>
    %165 = arith.xori %164, %cst_62 : vector<16x128xi1>
    %166 = arith.select %159, %154, %155 : vector<16x128xi1>, vector<16x128xf32>
    %167 = arith.minimumf %153, %166 : vector<16x128xf32>
    %168 = arith.maximumf %153, %166 : vector<16x128xf32>
    %169 = arith.select %165, %167, %168 : vector<16x128xi1>, vector<16x128xf32>
    %c127_i32_63 = arith.constant 127 : i32
    %170 = tpu.dynamic_rotate %169 by %c127_i32_63 dim 1 : vector<16x128xf32>, i32 -> vector<16x128xf32>
    %c1_i32_64 = arith.constant 1 : i32
    %171 = tpu.dynamic_rotate %169 by %c1_i32_64 dim 1 : vector<16x128xf32>, i32 -> vector<16x128xf32>
    %c1_i32_65 = arith.constant 1 : i32
    %172 = vector.broadcast %c1_i32_65 : i32 to vector<16x128xi32>
    %173 = arith.andi %25, %172 : vector<16x128xi32>
    %c0_i32_66 = arith.constant 0 : i32
    %174 = vector.broadcast %c0_i32_66 : i32 to vector<16x128xi32>
    %175 = arith.cmpi eq, %173, %174 : vector<16x128xi32>
    %c16_i32_67 = arith.constant 16 : i32
    %176 = vector.broadcast %c16_i32_67 : i32 to vector<16x128xi32>
    %177 = arith.andi %25, %176 : vector<16x128xi32>
    %c0_i32_68 = arith.constant 0 : i32
    %178 = vector.broadcast %c0_i32_68 : i32 to vector<16x128xi32>
    %179 = arith.cmpi eq, %177, %178 : vector<16x128xi32>
    %180 = arith.xori %179, %175 : vector<16x128xi1>
    %cst_69 = arith.constant dense<true> : vector<16x128xi1>
    %181 = arith.xori %180, %cst_69 : vector<16x128xi1>
    %182 = arith.select %175, %170, %171 : vector<16x128xi1>, vector<16x128xf32>
    %183 = arith.minimumf %169, %182 : vector<16x128xf32>
    %184 = arith.maximumf %169, %182 : vector<16x128xf32>
    %185 = arith.select %181, %183, %184 : vector<16x128xi1>, vector<16x128xf32>
    %c112_i32 = arith.constant 112 : i32
    %186 = tpu.dynamic_rotate %185 by %c112_i32 dim 1 : vector<16x128xf32>, i32 -> vector<16x128xf32>
    %c16_i32_70 = arith.constant 16 : i32
    %187 = tpu.dynamic_rotate %185 by %c16_i32_70 dim 1 : vector<16x128xf32>, i32 -> vector<16x128xf32>
    %c16_i32_71 = arith.constant 16 : i32
    %188 = vector.broadcast %c16_i32_71 : i32 to vector<16x128xi32>
    %189 = arith.andi %25, %188 : vector<16x128xi32>
    %c0_i32_72 = arith.constant 0 : i32
    %190 = vector.broadcast %c0_i32_72 : i32 to vector<16x128xi32>
    %191 = arith.cmpi eq, %189, %190 : vector<16x128xi32>
    %c32_i32 = arith.constant 32 : i32
    %192 = vector.broadcast %c32_i32 : i32 to vector<16x128xi32>
    %193 = arith.andi %25, %192 : vector<16x128xi32>
    %c0_i32_73 = arith.constant 0 : i32
    %194 = vector.broadcast %c0_i32_73 : i32 to vector<16x128xi32>
    %195 = arith.cmpi eq, %193, %194 : vector<16x128xi32>
    %196 = arith.xori %195, %191 : vector<16x128xi1>
    %cst_74 = arith.constant dense<true> : vector<16x128xi1>
    %197 = arith.xori %196, %cst_74 : vector<16x128xi1>
    %198 = arith.select %191, %186, %187 : vector<16x128xi1>, vector<16x128xf32>
    %199 = arith.minimumf %185, %198 : vector<16x128xf32>
    %200 = arith.maximumf %185, %198 : vector<16x128xf32>
    %201 = arith.select %197, %199, %200 : vector<16x128xi1>, vector<16x128xf32>
    %c120_i32_75 = arith.constant 120 : i32
    %202 = tpu.dynamic_rotate %201 by %c120_i32_75 dim 1 : vector<16x128xf32>, i32 -> vector<16x128xf32>
    %c8_i32_76 = arith.constant 8 : i32
    %203 = tpu.dynamic_rotate %201 by %c8_i32_76 dim 1 : vector<16x128xf32>, i32 -> vector<16x128xf32>
    %c8_i32_77 = arith.constant 8 : i32
    %204 = vector.broadcast %c8_i32_77 : i32 to vector<16x128xi32>
    %205 = arith.andi %25, %204 : vector<16x128xi32>
    %c0_i32_78 = arith.constant 0 : i32
    %206 = vector.broadcast %c0_i32_78 : i32 to vector<16x128xi32>
    %207 = arith.cmpi eq, %205, %206 : vector<16x128xi32>
    %c32_i32_79 = arith.constant 32 : i32
    %208 = vector.broadcast %c32_i32_79 : i32 to vector<16x128xi32>
    %209 = arith.andi %25, %208 : vector<16x128xi32>
    %c0_i32_80 = arith.constant 0 : i32
    %210 = vector.broadcast %c0_i32_80 : i32 to vector<16x128xi32>
    %211 = arith.cmpi eq, %209, %210 : vector<16x128xi32>
    %212 = arith.xori %211, %207 : vector<16x128xi1>
    %cst_81 = arith.constant dense<true> : vector<16x128xi1>
    %213 = arith.xori %212, %cst_81 : vector<16x128xi1>
    %214 = arith.select %207, %202, %203 : vector<16x128xi1>, vector<16x128xf32>
    %215 = arith.minimumf %201, %214 : vector<16x128xf32>
    %216 = arith.maximumf %201, %214 : vector<16x128xf32>
    %217 = arith.select %213, %215, %216 : vector<16x128xi1>, vector<16x128xf32>
    %c124_i32_82 = arith.constant 124 : i32
    %218 = tpu.dynamic_rotate %217 by %c124_i32_82 dim 1 : vector<16x128xf32>, i32 -> vector<16x128xf32>
    %c4_i32_83 = arith.constant 4 : i32
    %219 = tpu.dynamic_rotate %217 by %c4_i32_83 dim 1 : vector<16x128xf32>, i32 -> vector<16x128xf32>
    %c4_i32_84 = arith.constant 4 : i32
    %220 = vector.broadcast %c4_i32_84 : i32 to vector<16x128xi32>
    %221 = arith.andi %25, %220 : vector<16x128xi32>
    %c0_i32_85 = arith.constant 0 : i32
    %222 = vector.broadcast %c0_i32_85 : i32 to vector<16x128xi32>
    %223 = arith.cmpi eq, %221, %222 : vector<16x128xi32>
    %c32_i32_86 = arith.constant 32 : i32
    %224 = vector.broadcast %c32_i32_86 : i32 to vector<16x128xi32>
    %225 = arith.andi %25, %224 : vector<16x128xi32>
    %c0_i32_87 = arith.constant 0 : i32
    %226 = vector.broadcast %c0_i32_87 : i32 to vector<16x128xi32>
    %227 = arith.cmpi eq, %225, %226 : vector<16x128xi32>
    %228 = arith.xori %227, %223 : vector<16x128xi1>
    %cst_88 = arith.constant dense<true> : vector<16x128xi1>
    %229 = arith.xori %228, %cst_88 : vector<16x128xi1>
    %230 = arith.select %223, %218, %219 : vector<16x128xi1>, vector<16x128xf32>
    %231 = arith.minimumf %217, %230 : vector<16x128xf32>
    %232 = arith.maximumf %217, %230 : vector<16x128xf32>
    %233 = arith.select %229, %231, %232 : vector<16x128xi1>, vector<16x128xf32>
    %c126_i32_89 = arith.constant 126 : i32
    %234 = tpu.dynamic_rotate %233 by %c126_i32_89 dim 1 : vector<16x128xf32>, i32 -> vector<16x128xf32>
    %c2_i32_90 = arith.constant 2 : i32
    %235 = tpu.dynamic_rotate %233 by %c2_i32_90 dim 1 : vector<16x128xf32>, i32 -> vector<16x128xf32>
    %c2_i32_91 = arith.constant 2 : i32
    %236 = vector.broadcast %c2_i32_91 : i32 to vector<16x128xi32>
    %237 = arith.andi %25, %236 : vector<16x128xi32>
    %c0_i32_92 = arith.constant 0 : i32
    %238 = vector.broadcast %c0_i32_92 : i32 to vector<16x128xi32>
    %239 = arith.cmpi eq, %237, %238 : vector<16x128xi32>
    %c32_i32_93 = arith.constant 32 : i32
    %240 = vector.broadcast %c32_i32_93 : i32 to vector<16x128xi32>
    %241 = arith.andi %25, %240 : vector<16x128xi32>
    %c0_i32_94 = arith.constant 0 : i32
    %242 = vector.broadcast %c0_i32_94 : i32 to vector<16x128xi32>
    %243 = arith.cmpi eq, %241, %242 : vector<16x128xi32>
    %244 = arith.xori %243, %239 : vector<16x128xi1>
    %cst_95 = arith.constant dense<true> : vector<16x128xi1>
    %245 = arith.xori %244, %cst_95 : vector<16x128xi1>
    %246 = arith.select %239, %234, %235 : vector<16x128xi1>, vector<16x128xf32>
    %247 = arith.minimumf %233, %246 : vector<16x128xf32>
    %248 = arith.maximumf %233, %246 : vector<16x128xf32>
    %249 = arith.select %245, %247, %248 : vector<16x128xi1>, vector<16x128xf32>
    %c127_i32_96 = arith.constant 127 : i32
    %250 = tpu.dynamic_rotate %249 by %c127_i32_96 dim 1 : vector<16x128xf32>, i32 -> vector<16x128xf32>
    %c1_i32_97 = arith.constant 1 : i32
    %251 = tpu.dynamic_rotate %249 by %c1_i32_97 dim 1 : vector<16x128xf32>, i32 -> vector<16x128xf32>
    %c1_i32_98 = arith.constant 1 : i32
    %252 = vector.broadcast %c1_i32_98 : i32 to vector<16x128xi32>
    %253 = arith.andi %25, %252 : vector<16x128xi32>
    %c0_i32_99 = arith.constant 0 : i32
    %254 = vector.broadcast %c0_i32_99 : i32 to vector<16x128xi32>
    %255 = arith.cmpi eq, %253, %254 : vector<16x128xi32>
    %c32_i32_100 = arith.constant 32 : i32
    %256 = vector.broadcast %c32_i32_100 : i32 to vector<16x128xi32>
    %257 = arith.andi %25, %256 : vector<16x128xi32>
    %c0_i32_101 = arith.constant 0 : i32
    %258 = vector.broadcast %c0_i32_101 : i32 to vector<16x128xi32>
    %259 = arith.cmpi eq, %257, %258 : vector<16x128xi32>
    %260 = arith.xori %259, %255 : vector<16x128xi1>
    %cst_102 = arith.constant dense<true> : vector<16x128xi1>
    %261 = arith.xori %260, %cst_102 : vector<16x128xi1>
    %262 = arith.select %255, %250, %251 : vector<16x128xi1>, vector<16x128xf32>
    %263 = arith.minimumf %249, %262 : vector<16x128xf32>
    %264 = arith.maximumf %249, %262 : vector<16x128xf32>
    %265 = arith.select %261, %263, %264 : vector<16x128xi1>, vector<16x128xf32>
    %c96_i32 = arith.constant 96 : i32
    %266 = tpu.dynamic_rotate %265 by %c96_i32 dim 1 : vector<16x128xf32>, i32 -> vector<16x128xf32>
    %c32_i32_103 = arith.constant 32 : i32
    %267 = tpu.dynamic_rotate %265 by %c32_i32_103 dim 1 : vector<16x128xf32>, i32 -> vector<16x128xf32>
    %c32_i32_104 = arith.constant 32 : i32
    %268 = vector.broadcast %c32_i32_104 : i32 to vector<16x128xi32>
    %269 = arith.andi %25, %268 : vector<16x128xi32>
    %c0_i32_105 = arith.constant 0 : i32
    %270 = vector.broadcast %c0_i32_105 : i32 to vector<16x128xi32>
    %271 = arith.cmpi eq, %269, %270 : vector<16x128xi32>
    %c64_i32 = arith.constant 64 : i32
    %272 = vector.broadcast %c64_i32 : i32 to vector<16x128xi32>
    %273 = arith.andi %25, %272 : vector<16x128xi32>
    %c0_i32_106 = arith.constant 0 : i32
    %274 = vector.broadcast %c0_i32_106 : i32 to vector<16x128xi32>
    %275 = arith.cmpi eq, %273, %274 : vector<16x128xi32>
    %276 = arith.xori %275, %271 : vector<16x128xi1>
    %cst_107 = arith.constant dense<true> : vector<16x128xi1>
    %277 = arith.xori %276, %cst_107 : vector<16x128xi1>
    %278 = arith.select %271, %266, %267 : vector<16x128xi1>, vector<16x128xf32>
    %279 = arith.minimumf %265, %278 : vector<16x128xf32>
    %280 = arith.maximumf %265, %278 : vector<16x128xf32>
    %281 = arith.select %277, %279, %280 : vector<16x128xi1>, vector<16x128xf32>
    %c112_i32_108 = arith.constant 112 : i32
    %282 = tpu.dynamic_rotate %281 by %c112_i32_108 dim 1 : vector<16x128xf32>, i32 -> vector<16x128xf32>
    %c16_i32_109 = arith.constant 16 : i32
    %283 = tpu.dynamic_rotate %281 by %c16_i32_109 dim 1 : vector<16x128xf32>, i32 -> vector<16x128xf32>
    %c16_i32_110 = arith.constant 16 : i32
    %284 = vector.broadcast %c16_i32_110 : i32 to vector<16x128xi32>
    %285 = arith.andi %25, %284 : vector<16x128xi32>
    %c0_i32_111 = arith.constant 0 : i32
    %286 = vector.broadcast %c0_i32_111 : i32 to vector<16x128xi32>
    %287 = arith.cmpi eq, %285, %286 : vector<16x128xi32>
    %c64_i32_112 = arith.constant 64 : i32
    %288 = vector.broadcast %c64_i32_112 : i32 to vector<16x128xi32>
    %289 = arith.andi %25, %288 : vector<16x128xi32>
    %c0_i32_113 = arith.constant 0 : i32
    %290 = vector.broadcast %c0_i32_113 : i32 to vector<16x128xi32>
    %291 = arith.cmpi eq, %289, %290 : vector<16x128xi32>
    %292 = arith.xori %291, %287 : vector<16x128xi1>
    %cst_114 = arith.constant dense<true> : vector<16x128xi1>
    %293 = arith.xori %292, %cst_114 : vector<16x128xi1>
    %294 = arith.select %287, %282, %283 : vector<16x128xi1>, vector<16x128xf32>
    %295 = arith.minimumf %281, %294 : vector<16x128xf32>
    %296 = arith.maximumf %281, %294 : vector<16x128xf32>
    %297 = arith.select %293, %295, %296 : vector<16x128xi1>, vector<16x128xf32>
    %c120_i32_115 = arith.constant 120 : i32
    %298 = tpu.dynamic_rotate %297 by %c120_i32_115 dim 1 : vector<16x128xf32>, i32 -> vector<16x128xf32>
    %c8_i32_116 = arith.constant 8 : i32
    %299 = tpu.dynamic_rotate %297 by %c8_i32_116 dim 1 : vector<16x128xf32>, i32 -> vector<16x128xf32>
    %c8_i32_117 = arith.constant 8 : i32
    %300 = vector.broadcast %c8_i32_117 : i32 to vector<16x128xi32>
    %301 = arith.andi %25, %300 : vector<16x128xi32>
    %c0_i32_118 = arith.constant 0 : i32
    %302 = vector.broadcast %c0_i32_118 : i32 to vector<16x128xi32>
    %303 = arith.cmpi eq, %301, %302 : vector<16x128xi32>
    %c64_i32_119 = arith.constant 64 : i32
    %304 = vector.broadcast %c64_i32_119 : i32 to vector<16x128xi32>
    %305 = arith.andi %25, %304 : vector<16x128xi32>
    %c0_i32_120 = arith.constant 0 : i32
    %306 = vector.broadcast %c0_i32_120 : i32 to vector<16x128xi32>
    %307 = arith.cmpi eq, %305, %306 : vector<16x128xi32>
    %308 = arith.xori %307, %303 : vector<16x128xi1>
    %cst_121 = arith.constant dense<true> : vector<16x128xi1>
    %309 = arith.xori %308, %cst_121 : vector<16x128xi1>
    %310 = arith.select %303, %298, %299 : vector<16x128xi1>, vector<16x128xf32>
    %311 = arith.minimumf %297, %310 : vector<16x128xf32>
    %312 = arith.maximumf %297, %310 : vector<16x128xf32>
    %313 = arith.select %309, %311, %312 : vector<16x128xi1>, vector<16x128xf32>
    %c124_i32_122 = arith.constant 124 : i32
    %314 = tpu.dynamic_rotate %313 by %c124_i32_122 dim 1 : vector<16x128xf32>, i32 -> vector<16x128xf32>
    %c4_i32_123 = arith.constant 4 : i32
    %315 = tpu.dynamic_rotate %313 by %c4_i32_123 dim 1 : vector<16x128xf32>, i32 -> vector<16x128xf32>
    %c4_i32_124 = arith.constant 4 : i32
    %316 = vector.broadcast %c4_i32_124 : i32 to vector<16x128xi32>
    %317 = arith.andi %25, %316 : vector<16x128xi32>
    %c0_i32_125 = arith.constant 0 : i32
    %318 = vector.broadcast %c0_i32_125 : i32 to vector<16x128xi32>
    %319 = arith.cmpi eq, %317, %318 : vector<16x128xi32>
    %c64_i32_126 = arith.constant 64 : i32
    %320 = vector.broadcast %c64_i32_126 : i32 to vector<16x128xi32>
    %321 = arith.andi %25, %320 : vector<16x128xi32>
    %c0_i32_127 = arith.constant 0 : i32
    %322 = vector.broadcast %c0_i32_127 : i32 to vector<16x128xi32>
    %323 = arith.cmpi eq, %321, %322 : vector<16x128xi32>
    %324 = arith.xori %323, %319 : vector<16x128xi1>
    %cst_128 = arith.constant dense<true> : vector<16x128xi1>
    %325 = arith.xori %324, %cst_128 : vector<16x128xi1>
    %326 = arith.select %319, %314, %315 : vector<16x128xi1>, vector<16x128xf32>
    %327 = arith.minimumf %313, %326 : vector<16x128xf32>
    %328 = arith.maximumf %313, %326 : vector<16x128xf32>
    %329 = arith.select %325, %327, %328 : vector<16x128xi1>, vector<16x128xf32>
    %c126_i32_129 = arith.constant 126 : i32
    %330 = tpu.dynamic_rotate %329 by %c126_i32_129 dim 1 : vector<16x128xf32>, i32 -> vector<16x128xf32>
    %c2_i32_130 = arith.constant 2 : i32
    %331 = tpu.dynamic_rotate %329 by %c2_i32_130 dim 1 : vector<16x128xf32>, i32 -> vector<16x128xf32>
    %c2_i32_131 = arith.constant 2 : i32
    %332 = vector.broadcast %c2_i32_131 : i32 to vector<16x128xi32>
    %333 = arith.andi %25, %332 : vector<16x128xi32>
    %c0_i32_132 = arith.constant 0 : i32
    %334 = vector.broadcast %c0_i32_132 : i32 to vector<16x128xi32>
    %335 = arith.cmpi eq, %333, %334 : vector<16x128xi32>
    %c64_i32_133 = arith.constant 64 : i32
    %336 = vector.broadcast %c64_i32_133 : i32 to vector<16x128xi32>
    %337 = arith.andi %25, %336 : vector<16x128xi32>
    %c0_i32_134 = arith.constant 0 : i32
    %338 = vector.broadcast %c0_i32_134 : i32 to vector<16x128xi32>
    %339 = arith.cmpi eq, %337, %338 : vector<16x128xi32>
    %340 = arith.xori %339, %335 : vector<16x128xi1>
    %cst_135 = arith.constant dense<true> : vector<16x128xi1>
    %341 = arith.xori %340, %cst_135 : vector<16x128xi1>
    %342 = arith.select %335, %330, %331 : vector<16x128xi1>, vector<16x128xf32>
    %343 = arith.minimumf %329, %342 : vector<16x128xf32>
    %344 = arith.maximumf %329, %342 : vector<16x128xf32>
    %345 = arith.select %341, %343, %344 : vector<16x128xi1>, vector<16x128xf32>
    %c127_i32_136 = arith.constant 127 : i32
    %346 = tpu.dynamic_rotate %345 by %c127_i32_136 dim 1 : vector<16x128xf32>, i32 -> vector<16x128xf32>
    %c1_i32_137 = arith.constant 1 : i32
    %347 = tpu.dynamic_rotate %345 by %c1_i32_137 dim 1 : vector<16x128xf32>, i32 -> vector<16x128xf32>
    %c1_i32_138 = arith.constant 1 : i32
    %348 = vector.broadcast %c1_i32_138 : i32 to vector<16x128xi32>
    %349 = arith.andi %25, %348 : vector<16x128xi32>
    %c0_i32_139 = arith.constant 0 : i32
    %350 = vector.broadcast %c0_i32_139 : i32 to vector<16x128xi32>
    %351 = arith.cmpi eq, %349, %350 : vector<16x128xi32>
    %c64_i32_140 = arith.constant 64 : i32
    %352 = vector.broadcast %c64_i32_140 : i32 to vector<16x128xi32>
    %353 = arith.andi %25, %352 : vector<16x128xi32>
    %c0_i32_141 = arith.constant 0 : i32
    %354 = vector.broadcast %c0_i32_141 : i32 to vector<16x128xi32>
    %355 = arith.cmpi eq, %353, %354 : vector<16x128xi32>
    %356 = arith.xori %355, %351 : vector<16x128xi1>
    %cst_142 = arith.constant dense<true> : vector<16x128xi1>
    %357 = arith.xori %356, %cst_142 : vector<16x128xi1>
    %358 = arith.select %351, %346, %347 : vector<16x128xi1>, vector<16x128xf32>
    %359 = arith.minimumf %345, %358 : vector<16x128xf32>
    %360 = arith.maximumf %345, %358 : vector<16x128xf32>
    %361 = arith.select %357, %359, %360 : vector<16x128xi1>, vector<16x128xf32>
    %c64_i32_143 = arith.constant 64 : i32
    %362 = tpu.dynamic_rotate %361 by %c64_i32_143 dim 1 : vector<16x128xf32>, i32 -> vector<16x128xf32>
    %c64_i32_144 = arith.constant 64 : i32
    %363 = tpu.dynamic_rotate %361 by %c64_i32_144 dim 1 : vector<16x128xf32>, i32 -> vector<16x128xf32>
    %c64_i32_145 = arith.constant 64 : i32
    %364 = vector.broadcast %c64_i32_145 : i32 to vector<16x128xi32>
    %365 = arith.andi %25, %364 : vector<16x128xi32>
    %c0_i32_146 = arith.constant 0 : i32
    %366 = vector.broadcast %c0_i32_146 : i32 to vector<16x128xi32>
    %367 = arith.cmpi eq, %365, %366 : vector<16x128xi32>
    %c128_i32 = arith.constant 128 : i32
    %368 = vector.broadcast %c128_i32 : i32 to vector<16x128xi32>
    %369 = arith.andi %25, %368 : vector<16x128xi32>
    %c0_i32_147 = arith.constant 0 : i32
    %370 = vector.broadcast %c0_i32_147 : i32 to vector<16x128xi32>
    %371 = arith.cmpi eq, %369, %370 : vector<16x128xi32>
    %372 = arith.xori %371, %367 : vector<16x128xi1>
    %cst_148 = arith.constant dense<true> : vector<16x128xi1>
    %373 = arith.xori %372, %cst_148 : vector<16x128xi1>
    %374 = arith.select %367, %362, %363 : vector<16x128xi1>, vector<16x128xf32>
    %375 = arith.minimumf %361, %374 : vector<16x128xf32>
    %376 = arith.maximumf %361, %374 : vector<16x128xf32>
    %377 = arith.select %373, %375, %376 : vector<16x128xi1>, vector<16x128xf32>
    %c96_i32_149 = arith.constant 96 : i32
    %378 = tpu.dynamic_rotate %377 by %c96_i32_149 dim 1 : vector<16x128xf32>, i32 -> vector<16x128xf32>
    %c32_i32_150 = arith.constant 32 : i32
    %379 = tpu.dynamic_rotate %377 by %c32_i32_150 dim 1 : vector<16x128xf32>, i32 -> vector<16x128xf32>
    %c32_i32_151 = arith.constant 32 : i32
    %380 = vector.broadcast %c32_i32_151 : i32 to vector<16x128xi32>
    %381 = arith.andi %25, %380 : vector<16x128xi32>
    %c0_i32_152 = arith.constant 0 : i32
    %382 = vector.broadcast %c0_i32_152 : i32 to vector<16x128xi32>
    %383 = arith.cmpi eq, %381, %382 : vector<16x128xi32>
    %c128_i32_153 = arith.constant 128 : i32
    %384 = vector.broadcast %c128_i32_153 : i32 to vector<16x128xi32>
    %385 = arith.andi %25, %384 : vector<16x128xi32>
    %c0_i32_154 = arith.constant 0 : i32
    %386 = vector.broadcast %c0_i32_154 : i32 to vector<16x128xi32>
    %387 = arith.cmpi eq, %385, %386 : vector<16x128xi32>
    %388 = arith.xori %387, %383 : vector<16x128xi1>
    %cst_155 = arith.constant dense<true> : vector<16x128xi1>
    %389 = arith.xori %388, %cst_155 : vector<16x128xi1>
    %390 = arith.select %383, %378, %379 : vector<16x128xi1>, vector<16x128xf32>
    %391 = arith.minimumf %377, %390 : vector<16x128xf32>
    %392 = arith.maximumf %377, %390 : vector<16x128xf32>
    %393 = arith.select %389, %391, %392 : vector<16x128xi1>, vector<16x128xf32>
    %c112_i32_156 = arith.constant 112 : i32
    %394 = tpu.dynamic_rotate %393 by %c112_i32_156 dim 1 : vector<16x128xf32>, i32 -> vector<16x128xf32>
    %c16_i32_157 = arith.constant 16 : i32
    %395 = tpu.dynamic_rotate %393 by %c16_i32_157 dim 1 : vector<16x128xf32>, i32 -> vector<16x128xf32>
    %c16_i32_158 = arith.constant 16 : i32
    %396 = vector.broadcast %c16_i32_158 : i32 to vector<16x128xi32>
    %397 = arith.andi %25, %396 : vector<16x128xi32>
    %c0_i32_159 = arith.constant 0 : i32
    %398 = vector.broadcast %c0_i32_159 : i32 to vector<16x128xi32>
    %399 = arith.cmpi eq, %397, %398 : vector<16x128xi32>
    %c128_i32_160 = arith.constant 128 : i32
    %400 = vector.broadcast %c128_i32_160 : i32 to vector<16x128xi32>
    %401 = arith.andi %25, %400 : vector<16x128xi32>
    %c0_i32_161 = arith.constant 0 : i32
    %402 = vector.broadcast %c0_i32_161 : i32 to vector<16x128xi32>
    %403 = arith.cmpi eq, %401, %402 : vector<16x128xi32>
    %404 = arith.xori %403, %399 : vector<16x128xi1>
    %cst_162 = arith.constant dense<true> : vector<16x128xi1>
    %405 = arith.xori %404, %cst_162 : vector<16x128xi1>
    %406 = arith.select %399, %394, %395 : vector<16x128xi1>, vector<16x128xf32>
    %407 = arith.minimumf %393, %406 : vector<16x128xf32>
    %408 = arith.maximumf %393, %406 : vector<16x128xf32>
    %409 = arith.select %405, %407, %408 : vector<16x128xi1>, vector<16x128xf32>
    %c120_i32_163 = arith.constant 120 : i32
    %410 = tpu.dynamic_rotate %409 by %c120_i32_163 dim 1 : vector<16x128xf32>, i32 -> vector<16x128xf32>
    %c8_i32_164 = arith.constant 8 : i32
    %411 = tpu.dynamic_rotate %409 by %c8_i32_164 dim 1 : vector<16x128xf32>, i32 -> vector<16x128xf32>
    %c8_i32_165 = arith.constant 8 : i32
    %412 = vector.broadcast %c8_i32_165 : i32 to vector<16x128xi32>
    %413 = arith.andi %25, %412 : vector<16x128xi32>
    %c0_i32_166 = arith.constant 0 : i32
    %414 = vector.broadcast %c0_i32_166 : i32 to vector<16x128xi32>
    %415 = arith.cmpi eq, %413, %414 : vector<16x128xi32>
    %c128_i32_167 = arith.constant 128 : i32
    %416 = vector.broadcast %c128_i32_167 : i32 to vector<16x128xi32>
    %417 = arith.andi %25, %416 : vector<16x128xi32>
    %c0_i32_168 = arith.constant 0 : i32
    %418 = vector.broadcast %c0_i32_168 : i32 to vector<16x128xi32>
    %419 = arith.cmpi eq, %417, %418 : vector<16x128xi32>
    %420 = arith.xori %419, %415 : vector<16x128xi1>
    %cst_169 = arith.constant dense<true> : vector<16x128xi1>
    %421 = arith.xori %420, %cst_169 : vector<16x128xi1>
    %422 = arith.select %415, %410, %411 : vector<16x128xi1>, vector<16x128xf32>
    %423 = arith.minimumf %409, %422 : vector<16x128xf32>
    %424 = arith.maximumf %409, %422 : vector<16x128xf32>
    %425 = arith.select %421, %423, %424 : vector<16x128xi1>, vector<16x128xf32>
    %c124_i32_170 = arith.constant 124 : i32
    %426 = tpu.dynamic_rotate %425 by %c124_i32_170 dim 1 : vector<16x128xf32>, i32 -> vector<16x128xf32>
    %c4_i32_171 = arith.constant 4 : i32
    %427 = tpu.dynamic_rotate %425 by %c4_i32_171 dim 1 : vector<16x128xf32>, i32 -> vector<16x128xf32>
    %c4_i32_172 = arith.constant 4 : i32
    %428 = vector.broadcast %c4_i32_172 : i32 to vector<16x128xi32>
    %429 = arith.andi %25, %428 : vector<16x128xi32>
    %c0_i32_173 = arith.constant 0 : i32
    %430 = vector.broadcast %c0_i32_173 : i32 to vector<16x128xi32>
    %431 = arith.cmpi eq, %429, %430 : vector<16x128xi32>
    %c128_i32_174 = arith.constant 128 : i32
    %432 = vector.broadcast %c128_i32_174 : i32 to vector<16x128xi32>
    %433 = arith.andi %25, %432 : vector<16x128xi32>
    %c0_i32_175 = arith.constant 0 : i32
    %434 = vector.broadcast %c0_i32_175 : i32 to vector<16x128xi32>
    %435 = arith.cmpi eq, %433, %434 : vector<16x128xi32>
    %436 = arith.xori %435, %431 : vector<16x128xi1>
    %cst_176 = arith.constant dense<true> : vector<16x128xi1>
    %437 = arith.xori %436, %cst_176 : vector<16x128xi1>
    %438 = arith.select %431, %426, %427 : vector<16x128xi1>, vector<16x128xf32>
    %439 = arith.minimumf %425, %438 : vector<16x128xf32>
    %440 = arith.maximumf %425, %438 : vector<16x128xf32>
    %441 = arith.select %437, %439, %440 : vector<16x128xi1>, vector<16x128xf32>
    %c126_i32_177 = arith.constant 126 : i32
    %442 = tpu.dynamic_rotate %441 by %c126_i32_177 dim 1 : vector<16x128xf32>, i32 -> vector<16x128xf32>
    %c2_i32_178 = arith.constant 2 : i32
    %443 = tpu.dynamic_rotate %441 by %c2_i32_178 dim 1 : vector<16x128xf32>, i32 -> vector<16x128xf32>
    %c2_i32_179 = arith.constant 2 : i32
    %444 = vector.broadcast %c2_i32_179 : i32 to vector<16x128xi32>
    %445 = arith.andi %25, %444 : vector<16x128xi32>
    %c0_i32_180 = arith.constant 0 : i32
    %446 = vector.broadcast %c0_i32_180 : i32 to vector<16x128xi32>
    %447 = arith.cmpi eq, %445, %446 : vector<16x128xi32>
    %c128_i32_181 = arith.constant 128 : i32
    %448 = vector.broadcast %c128_i32_181 : i32 to vector<16x128xi32>
    %449 = arith.andi %25, %448 : vector<16x128xi32>
    %c0_i32_182 = arith.constant 0 : i32
    %450 = vector.broadcast %c0_i32_182 : i32 to vector<16x128xi32>
    %451 = arith.cmpi eq, %449, %450 : vector<16x128xi32>
    %452 = arith.xori %451, %447 : vector<16x128xi1>
    %cst_183 = arith.constant dense<true> : vector<16x128xi1>
    %453 = arith.xori %452, %cst_183 : vector<16x128xi1>
    %454 = arith.select %447, %442, %443 : vector<16x128xi1>, vector<16x128xf32>
    %455 = arith.minimumf %441, %454 : vector<16x128xf32>
    %456 = arith.maximumf %441, %454 : vector<16x128xf32>
    %457 = arith.select %453, %455, %456 : vector<16x128xi1>, vector<16x128xf32>
    %c127_i32_184 = arith.constant 127 : i32
    %458 = tpu.dynamic_rotate %457 by %c127_i32_184 dim 1 : vector<16x128xf32>, i32 -> vector<16x128xf32>
    %c1_i32_185 = arith.constant 1 : i32
    %459 = tpu.dynamic_rotate %457 by %c1_i32_185 dim 1 : vector<16x128xf32>, i32 -> vector<16x128xf32>
    %c1_i32_186 = arith.constant 1 : i32
    %460 = vector.broadcast %c1_i32_186 : i32 to vector<16x128xi32>
    %461 = arith.andi %25, %460 : vector<16x128xi32>
    %c0_i32_187 = arith.constant 0 : i32
    %462 = vector.broadcast %c0_i32_187 : i32 to vector<16x128xi32>
    %463 = arith.cmpi eq, %461, %462 : vector<16x128xi32>
    %c128_i32_188 = arith.constant 128 : i32
    %464 = vector.broadcast %c128_i32_188 : i32 to vector<16x128xi32>
    %465 = arith.andi %25, %464 : vector<16x128xi32>
    %c0_i32_189 = arith.constant 0 : i32
    %466 = vector.broadcast %c0_i32_189 : i32 to vector<16x128xi32>
    %467 = arith.cmpi eq, %465, %466 : vector<16x128xi32>
    %468 = arith.xori %467, %463 : vector<16x128xi1>
    %cst_190 = arith.constant dense<true> : vector<16x128xi1>
    %469 = arith.xori %468, %cst_190 : vector<16x128xi1>
    %470 = arith.select %463, %458, %459 : vector<16x128xi1>, vector<16x128xf32>
    %471 = arith.minimumf %457, %470 : vector<16x128xf32>
    %472 = arith.maximumf %457, %470 : vector<16x128xf32>
    %473 = arith.select %469, %471, %472 : vector<16x128xi1>, vector<16x128xf32>
    %474 = vector.extract_strided_slice %473 {offsets = [0, 0], sizes = [8, 128], strides = [1, 1]} : vector<16x128xf32> to vector<8x128xf32>
    %475 = vector.extract_strided_slice %473 {offsets = [8, 0], sizes = [8, 128], strides = [1, 1]} : vector<16x128xf32> to vector<8x128xf32>
    %476 = arith.subf %474, %475 : vector<8x128xf32>
    %477 = arith.mulf %476, %476 : vector<8x128xf32>
    %478 = tpu.iota {dimensions = array<i32: 1>} : vector<1x128xi32>
    %cst_191 = arith.constant 0.000000e+00 : f32
    %479 = vector.broadcast %cst_191 : f32 to vector<1x128xf32>
    %cst_192 = arith.constant dense<0.000000e+00> : vector<8xf32>
    %480 = vector.multi_reduction <add>, %477, %cst_192 [1] : vector<8x128xf32> to vector<8xf32>
    %481 = vector.shape_cast %480 : vector<8xf32> to vector<8x1xf32>
    %cst_193 = arith.constant dense<0.000000e+00> : vector<1xf32>
    %482 = vector.multi_reduction <add>, %481, %cst_193 [0] : vector<8x1xf32> to vector<1xf32>
    %483 = vector.shape_cast %482 : vector<1xf32> to vector<1x1xf32>
    %c0_i32_194 = arith.constant 0 : i32
    %484 = vector.broadcast %c0_i32_194 : i32 to vector<1x128xi32>
    %485 = arith.cmpi eq, %478, %484 : vector<1x128xi32>
    %486 = vector.shape_cast %483 : vector<1x1xf32> to vector<1x1xf32>
    %487 = vector.broadcast %486 : vector<1x1xf32> to vector<1x128xf32>
    %488 = arith.select %485, %487, %479 : vector<1x128xi1>, vector<1x128xf32>
    %cst_195 = arith.constant 7.812500e-03 : f32
    %489 = vector.broadcast %cst_195 : f32 to vector<1x128xf32>
    %490 = arith.mulf %488, %489 : vector<1x128xf32>
    %c0_196 = arith.constant 0 : index
    %c0_197 = arith.constant 0 : index
    %c0_198 = arith.constant 0 : index
    %491 = vector.load %arg5[%c0_196, %c0_197, %c0_198] : memref<1x1x128xf32, #tpu.memory_space<vmem>>, vector<1x1x128xf32>
    %492 = vector.shape_cast %491 : vector<1x1x128xf32> to vector<1x128xf32>
    %493 = vector.shape_cast %490 : vector<1x128xf32> to vector<1x1x128xf32>
    tpu.vector_store %arg5[%c0_196, %c0_197, %c0_198], %493 {strides = array<i32>} : memref<1x1x128xf32, #tpu.memory_space<vmem>>, vector<1x1x128xf32>,
    return
  }
  func.func @transform_0(%arg0: i32) -> (i32, i32) {
    %c0_i32 = arith.constant 0 : i32
    %c0_i32_0 = arith.constant 0 : i32
    %c0_i32_1 = arith.constant 0 : i32
    return %c0_i32, %c0_i32_0 : i32, i32
  }
  func.func @transform_1(%arg0: i32) -> (i32, i32) {
    %c0_i32 = arith.constant 0 : i32
    %c0_i32_0 = arith.constant 0 : i32
    %c0_i32_1 = arith.constant 0 : i32
    return %c0_i32, %c0_i32_0 : i32, i32
  }
  func.func @transform_2(%arg0: i32) -> (i32, i32, i32, i32) {
    %c0_i32 = arith.constant 0 : i32
    %c0_i32_0 = arith.constant 0 : i32
    %c0_i32_1 = arith.constant 0 : i32
    %c0_i32_2 = arith.constant 0 : i32
    return %arg0, %c0_i32, %c0_i32_0, %c0_i32_1 : i32, i32, i32, i32
  }
  func.func @transform_3(%arg0: i32) -> (i32, i32, i32, i32) {
    %c0_i32 = arith.constant 0 : i32
    %c0_i32_0 = arith.constant 0 : i32
    %c0_i32_1 = arith.constant 0 : i32
    %c0_i32_2 = arith.constant 0 : i32
    return %arg0, %c0_i32, %c0_i32_0, %c0_i32_1 : i32, i32, i32, i32
  }
  func.func @transform_4(%arg0: i32) -> (i32, i32, i32) {
    %c0_i32 = arith.constant 0 : i32
    %c0_i32_0 = arith.constant 0 : i32
    %c0_i32_1 = arith.constant 0 : i32
    return %arg0, %c0_i32, %c0_i32_0 : i32, i32, i32
  }
}

</mosaic_0001>

<llo_original>
// kernel: _sliced_ws_loss_batched.1
$region0: #{_sliced_ws_loss_batched.1}
  #allocation0 [shape = 'u32[]', space=smem, size = 0x4, offset = 0x4, fixed_abs, tag = 'smem constant byte address 0x4 - core index']
  #allocation1 [shape = 'u32[144,128]{1,0:T(1,128)}', space=vmem, size = 0x12000, scoped, tag = 'internal scratch']
  %s0 = inlined_call_operand.vmem [shape: f32[8,128], index: 0, kind: input, shape index: {}]
  %s1 = inlined_call_operand.vmem [shape: f32[8,128], index: 1, kind: input, shape index: {}]
  %s2 = inlined_call_operand.vmem [shape: f32[1,2,1,128], index: 2, kind: input, shape index: {}]
  %s3 = inlined_call_operand.vmem [shape: f32[1,2,1,128], index: 3, kind: input, shape index: {}]
  %s4 = inlined_call_operand.hbm [shape: f32[1,1,128], index: 4, kind: output, shape index: {}]
  %s5 = sld [smem:[#allocation0]]
  $region26: #{_sliced_ws_loss_batched.1} parent=0
    _
  %s7 = ssub.s32 1, %s5
  %s8 = scalar_select 0, %s7, %s5
  $region1: #{_sliced_ws_loss_batched.1} parent=0
    #allocation2 [shape = 'u8[512]{0}', space=vmem, size = 0x400, scoped, tag = 'output window, operand 0, single buffered']
    #allocation3 [shape = 's32[1]{0}', space=sflag, size = 0x4, scoped, tag = 'scoped memory for _sliced_ws_loss_batched.1']
    %9 = vsyncpa [#allocation3], 0
    // Predicated region
    $region2: #{_sliced_ws_loss_batched.1} parent=1 // pred_check
      _
    $region3: #{_sliced_ws_loss_batched.1} parent=1 // pred_check_branch
      %11 = sbr.rel (0) target = $region5
    $region4: #{_sliced_ws_loss_batched.1} parent=1 // pred_region
      _
    $region5: #{_sliced_ws_loss_batched.1} parent=1 // pred_fallthru
      _
    // Predicated region
    $region6: #{_sliced_ws_loss_batched.1} parent=1 // pred_check
      _
    $region7: #{_sliced_ws_loss_batched.1} parent=1 // pred_check_branch
      %13 = sbr.rel (0) target = $region9
    $region8: #{_sliced_ws_loss_batched.1} parent=1 // pred_region
      _
    $region9: #{_sliced_ws_loss_batched.1} parent=1 // pred_fallthru
      _
    // Predicated region
    $region10: #{_sliced_ws_loss_batched.1} parent=1 // pred_check
      _
    $region11: #{_sliced_ws_loss_batched.1} parent=1 // pred_check_branch
      %15 = sbr.rel (0) target = $region13
    $region12: #{_sliced_ws_loss_batched.1} parent=1 // pred_region
      _
    $region13: #{_sliced_ws_loss_batched.1} parent=1 // pred_fallthru
      _
    // Predicated region
    $region14: #{_sliced_ws_loss_batched.1} parent=1 // pred_check
      _
    $region15: #{_sliced_ws_loss_batched.1} parent=1 // pred_check_branch
      %17 = sbr.rel (0) target = $region17
    $region16: #{_sliced_ws_loss_batched.1} parent=1 // pred_region
      _
    $region17: #{_sliced_ws_loss_batched.1} parent=1 // pred_fallthru
      _
    %v18 = vld [vmem:[%s0] sm:$0xff]
    %v19 = vld [vmem:[%s1] sm:$0xff]
    %v20 = vld [vmem:[%s2] sm:$0x1]
    %v21 = vld [vmem:[%s2 + $0x1] sm:$0x1]
    %v22 = vld [vmem:[%s3] sm:$0x1]
    %v23 = vld [vmem:[%s3 + $0x1] sm:$0x1]
    %v25 = vlaneseq
    %v26 = vshrl.u32 %v25, 7
    %v27 = vsub.s32 0, %v26
    %v28 = vrot.slane %v20, %v27
    %v30 = vmul.f32 %v18, %v28
    %v32 = vlaneseq
    %v33 = vshrl.u32 %v32, 7
    %v34 = vsub.s32 0, %v33
    %v35 = vrot.slane %v21, %v34
    %v37 = vmul.f32 %v19, %v35
    %v38 = vadd.f32 %v30, %v37
    %v40 = vlaneseq
    %v41 = vshrl.u32 %v40, 7
    %v42 = vsub.s32 0, %v41
    %v43 = vrot.slane %v22, %v42
    %v45 = vmul.f32 %v18, %v43
    %v47 = vlaneseq
    %v48 = vshrl.u32 %v47, 7
    %v49 = vsub.s32 0, %v48
    %v50 = vrot.slane %v23, %v49
    %v52 = vmul.f32 %v19, %v50
    %v53 = vadd.f32 %v45, %v52
    %v54 = vlaneseq
    %v55 = vand.u32 %v54, 127
    %56 = vrot.lane.b32.xlu0 %v38, 127
    %v57 = vpop.permute.xlu0 %56
    %58 = vrot.lane.b32.xlu0 %v53, 127
    %v59 = vpop.permute.xlu0 %58
    %60 = vrot.lane.b32.xlu0 %v38, 1
    %v61 = vpop.permute.xlu0 %60
    %62 = vrot.lane.b32.xlu0 %v53, 1
    %v63 = vpop.permute.xlu0 %62
    %v64 = vand.u32 %v55, 1
    %vm65 = vcmp.eq.s32.totalorder %v64, 0
    %v66 = vand.u32 %v55, 2
    %vm67 = vcmp.eq.s32.totalorder %v66, 0
    %vm68 = vmxor %vm67, %vm65
    %vm69 = vmxor %vm68, 1
    %v70 = vsel %vm65, %v57, %v61
    %v71 = vsel %vm65, %v59, %v63
    %v72 = vmin.f32 %v38, %v70
    %v73 = vmin.f32 %v53, %v71
    %v74 = vmax.f32 %v38, %v70
    %v75 = vmax.f32 %v53, %v71
    %v76 = vsel %vm69, %v72, %v74
    %v77 = vsel %vm69, %v73, %v75
    %78 = vrot.lane.b32.xlu0 %v76, 126
    %v79 = vpop.permute.xlu0 %78
    %80 = vrot.lane.b32.xlu0 %v77, 126
    %v81 = vpop.permute.xlu0 %80
    %82 = vrot.lane.b32.xlu0 %v76, 2
    %v83 = vpop.permute.xlu0 %82
    %84 = vrot.lane.b32.xlu0 %v77, 2
    %v85 = vpop.permute.xlu0 %84
    %v86 = vand.u32 %v55, 4
    %vm87 = vcmp.eq.s32.totalorder %v86, 0
    %vm88 = vmxor %vm87, %vm67
    %vm89 = vmxor %vm88, 1
    %v90 = vsel %vm67, %v79, %v83
    %v91 = vsel %vm67, %v81, %v85
    %v92 = vmin.f32 %v76, %v90
    %v93 = vmin.f32 %v77, %v91
    %v94 = vmax.f32 %v76, %v90
    %v95 = vmax.f32 %v77, %v91
    %v96 = vsel %vm89, %v92, %v94
    %v97 = vsel %vm89, %v93, %v95
    %98 = vrot.lane.b32.xlu0 %v96, 127
    %v99 = vpop.permute.xlu0 %98
    %100 = vrot.lane.b32.xlu0 %v97, 127
    %v101 = vpop.permute.xlu0 %100
    %102 = vrot.lane.b32.xlu0 %v96, 1
    %v103 = vpop.permute.xlu0 %102
    %104 = vrot.lane.b32.xlu0 %v97, 1
    %v105 = vpop.permute.xlu0 %104
    %vm106 = vmxor %vm87, %vm65
    %vm107 = vmxor %vm106, 1
    %v108 = vsel %vm65, %v99, %v103
    %v109 = vsel %vm65, %v101, %v105
    %v110 = vmin.f32 %v96, %v108
    %v111 = vmin.f32 %v97, %v109
    %v112 = vmax.f32 %v96, %v108
    %v113 = vmax.f32 %v97, %v109
    %v114 = vsel %vm107, %v110, %v112
    %v115 = vsel %vm107, %v111, %v113
    %116 = vrot.lane.b32.xlu0 %v114, 124
    %v117 = vpop.permute.xlu0 %116
    %118 = vrot.lane.b32.xlu0 %v115, 124
    %v119 = vpop.permute.xlu0 %118
    %120 = vrot.lane.b32.xlu0 %v114, 4
    %v121 = vpop.permute.xlu0 %120
    %122 = vrot.lane.b32.xlu0 %v115, 4
    %v123 = vpop.permute.xlu0 %122
    %v124 = vand.u32 %v55, 8
    %vm125 = vcmp.eq.s32.totalorder %v124, 0
    %vm126 = vmxor %vm125, %vm87
    %vm127 = vmxor %vm126, 1
    %v128 = vsel %vm87, %v117, %v121
    %v129 = vsel %vm87, %v119, %v123
    %v130 = vmin.f32 %v114, %v128
    %v131 = vmin.f32 %v115, %v129
    %v132 = vmax.f32 %v114, %v128
    %v133 = vmax.f32 %v115, %v129
    %v134 = vsel %vm127, %v130, %v132
    %v135 = vsel %vm127, %v131, %v133
    %136 = vrot.lane.b32.xlu0 %v134, 126
    %v137 = vpop.permute.xlu0 %136
    %138 = vrot.lane.b32.xlu0 %v135, 126
    %v139 = vpop.permute.xlu0 %138
    %140 = vrot.lane.b32.xlu0 %v134, 2
    %v141 = vpop.permute.xlu0 %140
    %142 = vrot.lane.b32.xlu0 %v135, 2
    %v143 = vpop.permute.xlu0 %142
    %vm144 = vmxor %vm125, %vm67
    %vm145 = vmxor %vm144, 1
    %v146 = vsel %vm67, %v137, %v141
    %v147 = vsel %vm67, %v139, %v143
    %v148 = vmin.f32 %v134, %v146
    %v149 = vmin.f32 %v135, %v147
    %v150 = vmax.f32 %v134, %v146
    %v151 = vmax.f32 %v135, %v147
    %v152 = vsel %vm145, %v148, %v150
    %v153 = vsel %vm145, %v149, %v151
    %154 = vrot.lane.b32.xlu0 %v152, 127
    %v155 = vpop.permute.xlu0 %154
    %156 = vrot.lane.b32.xlu0 %v153, 127
    %v157 = vpop.permute.xlu0 %156
    %158 = vrot.lane.b32.xlu0 %v152, 1
    %v159 = vpop.permute.xlu0 %158
    %160 = vrot.lane.b32.xlu0 %v153, 1
    %v161 = vpop.permute.xlu0 %160
    %vm162 = vmxor %vm125, %vm65
    %vm163 = vmxor %vm162, 1
    %v164 = vsel %vm65, %v155, %v159
    %v165 = vsel %vm65, %v157, %v161
    %v166 = vmin.f32 %v152, %v164
    %v167 = vmin.f32 %v153, %v165
    %v168 = vmax.f32 %v152, %v164
    %v169 = vmax.f32 %v153, %v165
    %v170 = vsel %vm163, %v166, %v168
    %v171 = vsel %vm163, %v167, %v169
    %172 = vrot.lane.b32.xlu0 %v170, 120
    %v173 = vpop.permute.xlu0 %172
    %174 = vrot.lane.b32.xlu0 %v171, 120
    %v175 = vpop.permute.xlu0 %174
    %176 = vrot.lane.b32.xlu0 %v170, 8
    %v177 = vpop.permute.xlu0 %176
    %178 = vrot.lane.b32.xlu0 %v171, 8
    %v179 = vpop.permute.xlu0 %178
    %v180 = vand.u32 %v55, 16
    %vm181 = vcmp.eq.s32.totalorder %v180, 0
    %vm182 = vmxor %vm181, %vm125
    %vm183 = vmxor %vm182, 1
    %v184 = vsel %vm125, %v173, %v177
    %v185 = vsel %vm125, %v175, %v179
    %v186 = vmin.f32 %v170, %v184
    %v187 = vmin.f32 %v171, %v185
    %v188 = vmax.f32 %v170, %v184
    %v189 = vmax.f32 %v171, %v185
    %v190 = vsel %vm183, %v186, %v188
    %v191 = vsel %vm183, %v187, %v189
    %192 = vrot.lane.b32.xlu0 %v190, 124
    %v193 = vpop.permute.xlu0 %192
    %194 = vrot.lane.b32.xlu0 %v191, 124
    %v195 = vpop.permute.xlu0 %194
    %196 = vrot.lane.b32.xlu0 %v190, 4
    %v197 = vpop.permute.xlu0 %196
    %198 = vrot.lane.b32.xlu0 %v191, 4
    %v199 = vpop.permute.xlu0 %198
    %vm200 = vmxor %vm181, %vm87
    %vm201 = vmxor %vm200, 1
    %v202 = vsel %vm87, %v193, %v197
    %v203 = vsel %vm87, %v195, %v199
    %v204 = vmin.f32 %v190, %v202
    %v205 = vmin.f32 %v191, %v203
    %v206 = vmax.f32 %v190, %v202
    %v207 = vmax.f32 %v191, %v203
    %v208 = vsel %vm201, %v204, %v206
    %v209 = vsel %vm201, %v205, %v207
    %210 = vrot.lane.b32.xlu0 %v208, 126
    %v211 = vpop.permute.xlu0 %210
    %212 = vrot.lane.b32.xlu0 %v209, 126
    %v213 = vpop.permute.xlu0 %212
    %214 = vrot.lane.b32.xlu0 %v208, 2
    %v215 = vpop.permute.xlu0 %214
    %216 = vrot.lane.b32.xlu0 %v209, 2
    %v217 = vpop.permute.xlu0 %216
    %vm218 = vmxor %vm181, %vm67
    %vm219 = vmxor %vm218, 1
    %v220 = vsel %vm67, %v211, %v215
    %v221 = vsel %vm67, %v213, %v217
    %v222 = vmin.f32 %v208, %v220
    %v223 = vmin.f32 %v209, %v221
    %v224 = vmax.f32 %v208, %v220
    %v225 = vmax.f32 %v209, %v221
    %v226 = vsel %vm219, %v222, %v224
    %v227 = vsel %vm219, %v223, %v225
    %228 = vrot.lane.b32.xlu0 %v226, 127
    %v229 = vpop.permute.xlu0 %228
    %230 = vrot.lane.b32.xlu0 %v227, 127
    %v231 = vpop.permute.xlu0 %230
    %232 = vrot.lane.b32.xlu0 %v226, 1
    %v233 = vpop.permute.xlu0 %232
    %234 = vrot.lane.b32.xlu0 %v227, 1
    %v235 = vpop.permute.xlu0 %234
    %vm236 = vmxor %vm181, %vm65
    %vm237 = vmxor %vm236, 1
    %v238 = vsel %vm65, %v229, %v233
    %v239 = vsel %vm65, %v231, %v235
    %v240 = vmin.f32 %v226, %v238
    %v241 = vmin.f32 %v227, %v239
    %v242 = vmax.f32 %v226, %v238
    %v243 = vmax.f32 %v227, %v239
    %v244 = vsel %vm237, %v240, %v242
    %v245 = vsel %vm237, %v241, %v243
    %246 = vrot.lane.b32.xlu0 %v244, 112
    %v247 = vpop.permute.xlu0 %246
    %248 = vrot.lane.b32.xlu0 %v245, 112
    %v249 = vpop.permute.xlu0 %248
    %250 = vrot.lane.b32.xlu0 %v244, 16
    %v251 = vpop.permute.xlu0 %250
    %252 = vrot.lane.b32.xlu0 %v245, 16
    %v253 = vpop.permute.xlu0 %252
    %v254 = vand.u32 %v55, 32
    %vm255 = vcmp.eq.s32.totalorder %v254, 0
    %vm256 = vmxor %vm255, %vm181
    %vm257 = vmxor %vm256, 1
    %v258 = vsel %vm181, %v247, %v251
    %v259 = vsel %vm181, %v249, %v253
    %v260 = vmin.f32 %v244, %v258
    %v261 = vmin.f32 %v245, %v259
    %v262 = vmax.f32 %v244, %v258
    %v263 = vmax.f32 %v245, %v259
    %v264 = vsel %vm257, %v260, %v262
    %v265 = vsel %vm257, %v261, %v263
    %266 = vrot.lane.b32.xlu0 %v264, 120
    %v267 = vpop.permute.xlu0 %266
    %268 = vrot.lane.b32.xlu0 %v265, 120
    %v269 = vpop.permute.xlu0 %268
    %270 = vrot.lane.b32.xlu0 %v264, 8
    %v271 = vpop.permute.xlu0 %270
    %272 = vrot.lane.b32.xlu0 %v265, 8
    %v273 = vpop.permute.xlu0 %272
    %vm274 = vmxor %vm255, %vm125
    %vm275 = vmxor %vm274, 1
    %v276 = vsel %vm125, %v267, %v271
    %v277 = vsel %vm125, %v269, %v273
    %v278 = vmin.f32 %v264, %v276
    %v279 = vmin.f32 %v265, %v277
    %v280 = vmax.f32 %v264, %v276
    %v281 = vmax.f32 %v265, %v277
    %v282 = vsel %vm275, %v278, %v280
    %v283 = vsel %vm275, %v279, %v281
    %284 = vrot.lane.b32.xlu0 %v282, 124
    %v285 = vpop.permute.xlu0 %284
    %286 = vrot.lane.b32.xlu0 %v283, 124
    %v287 = vpop.permute.xlu0 %286
    %288 = vrot.lane.b32.xlu0 %v282, 4
    %v289 = vpop.permute.xlu0 %288
    %290 = vrot.lane.b32.xlu0 %v283, 4
    %v291 = vpop.permute.xlu0 %290
    %vm292 = vmxor %vm255, %vm87
    %vm293 = vmxor %vm292, 1
    %v294 = vsel %vm87, %v285, %v289
    %v295 = vsel %vm87, %v287, %v291
    %v296 = vmin.f32 %v282, %v294
    %v297 = vmin.f32 %v283, %v295
    %v298 = vmax.f32 %v282, %v294
    %v299 = vmax.f32 %v283, %v295
    %v300 = vsel %vm293, %v296, %v298
    %v301 = vsel %vm293, %v297, %v299
    %302 = vrot.lane.b32.xlu0 %v300, 126
    %v303 = vpop.permute.xlu0 %302
    %304 = vrot.lane.b32.xlu0 %v301, 126
    %v305 = vpop.permute.xlu0 %304
    %306 = vrot.lane.b32.xlu0 %v300, 2
    %v307 = vpop.permute.xlu0 %306
    %308 = vrot.lane.b32.xlu0 %v301, 2
    %v309 = vpop.permute.xlu0 %308
    %vm310 = vmxor %vm255, %vm67
    %vm311 = vmxor %vm310, 1
    %v312 = vsel %vm67, %v303, %v307
    %v313 = vsel %vm67, %v305, %v309
    %v314 = vmin.f32 %v300, %v312
    %v315 = vmin.f32 %v301, %v313
    %v316 = vmax.f32 %v300, %v312
    %v317 = vmax.f32 %v301, %v313
    %v318 = vsel %vm311, %v314, %v316
    %v319 = vsel %vm311, %v315, %v317
    %320 = vrot.lane.b32.xlu0 %v318, 127
    %v321 = vpop.permute.xlu0 %320
    %322 = vrot.lane.b32.xlu0 %v319, 127
    %v323 = vpop.permute.xlu0 %322
    %324 = vrot.lane.b32.xlu0 %v318, 1
    %v325 = vpop.permute.xlu0 %324
    %326 = vrot.lane.b32.xlu0 %v319, 1
    %v327 = vpop.permute.xlu0 %326
    %vm328 = vmxor %vm255, %vm65
    %vm329 = vmxor %vm328, 1
    %v330 = vsel %vm65, %v321, %v325
    %v331 = vsel %vm65, %v323, %v327
    %v332 = vmin.f32 %v318, %v330
    %v333 = vmin.f32 %v319, %v331
    %v334 = vmax.f32 %v318, %v330
    %v335 = vmax.f32 %v319, %v331
    %v336 = vsel %vm329, %v332, %v334
    %v337 = vsel %vm329, %v333, %v335
    %338 = vrot.lane.b32.xlu0 %v336, 96
    %v339 = vpop.permute.xlu0 %338
    %340 = vrot.lane.b32.xlu0 %v337, 96
    %v341 = vpop.permute.xlu0 %340
    %342 = vrot.lane.b32.xlu0 %v336, 32
    %v343 = vpop.permute.xlu0 %342
    %344 = vrot.lane.b32.xlu0 %v337, 32
    %v345 = vpop.permute.xlu0 %344
    %v346 = vand.u32 %v55, 64
    %vm347 = vcmp.eq.s32.totalorder %v346, 0
    %vm348 = vmxor %vm347, %vm255
    %vm349 = vmxor %vm348, 1
    %v350 = vsel %vm255, %v339, %v343
    %v351 = vsel %vm255, %v341, %v345
    %v352 = vmin.f32 %v336, %v350
    %v353 = vmin.f32 %v337, %v351
    %v354 = vmax.f32 %v336, %v350
    %v355 = vmax.f32 %v337, %v351
    %v356 = vsel %vm349, %v352, %v354
    %v357 = vsel %vm349, %v353, %v355
    %358 = vrot.lane.b32.xlu0 %v356, 112
    %v359 = vpop.permute.xlu0 %358
    %360 = vrot.lane.b32.xlu0 %v357, 112
    %v361 = vpop.permute.xlu0 %360
    %362 = vrot.lane.b32.xlu0 %v356, 16
    %v363 = vpop.permute.xlu0 %362
    %364 = vrot.lane.b32.xlu0 %v357, 16
    %v365 = vpop.permute.xlu0 %364
    %vm366 = vmxor %vm347, %vm181
    %vm367 = vmxor %vm366, 1
    %v368 = vsel %vm181, %v359, %v363
    %v369 = vsel %vm181, %v361, %v365
    %v370 = vmin.f32 %v356, %v368
    %v371 = vmin.f32 %v357, %v369
    %v372 = vmax.f32 %v356, %v368
    %v373 = vmax.f32 %v357, %v369
    %v374 = vsel %vm367, %v370, %v372
    %v375 = vsel %vm367, %v371, %v373
    %376 = vrot.lane.b32.xlu0 %v374, 120
    %v377 = vpop.permute.xlu0 %376
    %378 = vrot.lane.b32.xlu0 %v375, 120
    %v379 = vpop.permute.xlu0 %378
    %380 = vrot.lane.b32.xlu0 %v374, 8
    %v381 = vpop.permute.xlu0 %380
    %382 = vrot.lane.b32.xlu0 %v375, 8
    %v383 = vpop.permute.xlu0 %382
    %vm384 = vmxor %vm347, %vm125
    %vm385 = vmxor %vm384, 1
    %v386 = vsel %vm125, %v377, %v381
    %v387 = vsel %vm125, %v379, %v383
    %v388 = vmin.f32 %v374, %v386
    %v389 = vmin.f32 %v375, %v387
    %v390 = vmax.f32 %v374, %v386
    %v391 = vmax.f32 %v375, %v387
    %v392 = vsel %vm385, %v388, %v390
    %v393 = vsel %vm385, %v389, %v391
    %394 = vrot.lane.b32.xlu0 %v392, 124
    %v395 = vpop.permute.xlu0 %394
    %396 = vrot.lane.b32.xlu0 %v393, 124
    %v397 = vpop.permute.xlu0 %396
    %398 = vrot.lane.b32.xlu0 %v392, 4
    %v399 = vpop.permute.xlu0 %398
    %400 = vrot.lane.b32.xlu0 %v393, 4
    %v401 = vpop.permute.xlu0 %400
    %vm402 = vmxor %vm347, %vm87
    %vm403 = vmxor %vm402, 1
    %v404 = vsel %vm87, %v395, %v399
    %v405 = vsel %vm87, %v397, %v401
    %v406 = vmin.f32 %v392, %v404
    %v407 = vmin.f32 %v393, %v405
    %v408 = vmax.f32 %v392, %v404
    %v409 = vmax.f32 %v393, %v405
    %v410 = vsel %vm403, %v406, %v408
    %v411 = vsel %vm403, %v407, %v409
    %412 = vrot.lane.b32.xlu0 %v410, 126
    %v413 = vpop.permute.xlu0 %412
    %414 = vrot.lane.b32.xlu0 %v411, 126
    %v415 = vpop.permute.xlu0 %414
    %416 = vrot.lane.b32.xlu0 %v410, 2
    %v417 = vpop.permute.xlu0 %416
    %418 = vrot.lane.b32.xlu0 %v411, 2
    %v419 = vpop.permute.xlu0 %418
    %vm420 = vmxor %vm347, %vm67
    %vm421 = vmxor %vm420, 1
    %v422 = vsel %vm67, %v413, %v417
    %v423 = vsel %vm67, %v415, %v419
    %v424 = vmin.f32 %v410, %v422
    %v425 = vmin.f32 %v411, %v423
    %v426 = vmax.f32 %v410, %v422
    %v427 = vmax.f32 %v411, %v423
    %v428 = vsel %vm421, %v424, %v426
    %v429 = vsel %vm421, %v425, %v427
    %430 = vrot.lane.b32.xlu0 %v428, 127
    %v431 = vpop.permute.xlu0 %430
    %432 = vrot.lane.b32.xlu0 %v429, 127
    %v433 = vpop.permute.xlu0 %432
    %434 = vrot.lane.b32.xlu0 %v428, 1
    %v435 = vpop.permute.xlu0 %434
    %436 = vrot.lane.b32.xlu0 %v429, 1
    %v437 = vpop.permute.xlu0 %436
    %vm438 = vmxor %vm347, %vm65
    %vm439 = vmxor %vm438, 1
    %v440 = vsel %vm65, %v431, %v435
    %v441 = vsel %vm65, %v433, %v437
    %v442 = vmin.f32 %v428, %v440
    %v443 = vmin.f32 %v429, %v441
    %v444 = vmax.f32 %v428, %v440
    %v445 = vmax.f32 %v429, %v441
    %v446 = vsel %vm439, %v442, %v444
    %v447 = vsel %vm439, %v443, %v445
    %448 = vrot.lane.b32.xlu0 %v446, 64
    %v449 = vpop.permute.xlu0 %448
    %450 = vrot.lane.b32.xlu0 %v447, 64
    %v451 = vpop.permute.xlu0 %450
    %v452 = vand.u32 %v55, 128
    %vm453 = vcmp.eq.s32.totalorder %v452, 0
    %vm454 = vmxor %vm453, %vm347
    %vm455 = vmxor %vm454, 1
    %v456 = vmin.f32 %v446, %v449
    %v457 = vmin.f32 %v447, %v451
    %v458 = vmax.f32 %v446, %v449
    %v459 = vmax.f32 %v447, %v451
    %v460 = vsel %vm455, %v456, %v458
    %v461 = vsel %vm455, %v457, %v459
    %462 = vrot.lane.b32.xlu0 %v460, 96
    %v463 = vpop.permute.xlu0 %462
    %464 = vrot.lane.b32.xlu0 %v461, 96
    %v465 = vpop.permute.xlu0 %464
    %466 = vrot.lane.b32.xlu0 %v460, 32
    %v467 = vpop.permute.xlu0 %466
    %468 = vrot.lane.b32.xlu0 %v461, 32
    %v469 = vpop.permute.xlu0 %468
    %vm470 = vmxor %vm453, %vm255
    %vm471 = vmxor %vm470, 1
    %v472 = vsel %vm255, %v463, %v467
    %v473 = vsel %vm255, %v465, %v469
    %v474 = vmin.f32 %v460, %v472
    %v475 = vmin.f32 %v461, %v473
    %v476 = vmax.f32 %v460, %v472
    %v477 = vmax.f32 %v461, %v473
    %v478 = vsel %vm471, %v474, %v476
    %v479 = vsel %vm471, %v475, %v477
    %480 = vrot.lane.b32.xlu0 %v478, 112
    %v481 = vpop.permute.xlu0 %480
    %482 = vrot.lane.b32.xlu0 %v479, 112
    %v483 = vpop.permute.xlu0 %482
    %484 = vrot.lane.b32.xlu0 %v478, 16
    %v485 = vpop.permute.xlu0 %484
    %486 = vrot.lane.b32.xlu0 %v479, 16
    %v487 = vpop.permute.xlu0 %486
    %vm488 = vmxor %vm453, %vm181
    %vm489 = vmxor %vm488, 1
    %v490 = vsel %vm181, %v481, %v485
    %v491 = vsel %vm181, %v483, %v487
    %v492 = vmin.f32 %v478, %v490
    %v493 = vmin.f32 %v479, %v491
    %v494 = vmax.f32 %v478, %v490
    %v495 = vmax.f32 %v479, %v491
    %v496 = vsel %vm489, %v492, %v494
    %v497 = vsel %vm489, %v493, %v495
    %498 = vrot.lane.b32.xlu0 %v496, 120
    %v499 = vpop.permute.xlu0 %498
    %500 = vrot.lane.b32.xlu0 %v497, 120
    %v501 = vpop.permute.xlu0 %500
    %502 = vrot.lane.b32.xlu0 %v496, 8
    %v503 = vpop.permute.xlu0 %502
    %504 = vrot.lane.b32.xlu0 %v497, 8
    %v505 = vpop.permute.xlu0 %504
    %vm506 = vmxor %vm453, %vm125
    %vm507 = vmxor %vm506, 1
    %v508 = vsel %vm125, %v499, %v503
    %v509 = vsel %vm125, %v501, %v505
    %v510 = vmin.f32 %v496, %v508
    %v511 = vmin.f32 %v497, %v509
    %v512 = vmax.f32 %v496, %v508
    %v513 = vmax.f32 %v497, %v509
    %v514 = vsel %vm507, %v510, %v512
    %v515 = vsel %vm507, %v511, %v513
    %516 = vrot.lane.b32.xlu0 %v514, 124
    %v517 = vpop.permute.xlu0 %516
    %518 = vrot.lane.b32.xlu0 %v515, 124
    %v519 = vpop.permute.xlu0 %518
    %520 = vrot.lane.b32.xlu0 %v514, 4
    %v521 = vpop.permute.xlu0 %520
    %522 = vrot.lane.b32.xlu0 %v515, 4
    %v523 = vpop.permute.xlu0 %522
    %vm524 = vmxor %vm453, %vm87
    %vm525 = vmxor %vm524, 1
    %v526 = vsel %vm87, %v517, %v521
    %v527 = vsel %vm87, %v519, %v523
    %v528 = vmin.f32 %v514, %v526
    %v529 = vmin.f32 %v515, %v527
    %v530 = vmax.f32 %v514, %v526
    %v531 = vmax.f32 %v515, %v527
    %v532 = vsel %vm525, %v528, %v530
    %v533 = vsel %vm525, %v529, %v531
    %534 = vrot.lane.b32.xlu0 %v532, 126
    %v535 = vpop.permute.xlu0 %534
    %536 = vrot.lane.b32.xlu0 %v533, 126
    %v537 = vpop.permute.xlu0 %536
    %538 = vrot.lane.b32.xlu0 %v532, 2
    %v539 = vpop.permute.xlu0 %538
    %540 = vrot.lane.b32.xlu0 %v533, 2
    %v541 = vpop.permute.xlu0 %540
    %vm542 = vmxor %vm453, %vm67
    %vm543 = vmxor %vm542, 1
    %v544 = vsel %vm67, %v535, %v539
    %v545 = vsel %vm67, %v537, %v541
    %v546 = vmin.f32 %v532, %v544
    %v547 = vmin.f32 %v533, %v545
    %v548 = vmax.f32 %v532, %v544
    %v549 = vmax.f32 %v533, %v545
    %v550 = vsel %vm543, %v546, %v548
    %v551 = vsel %vm543, %v547, %v549
    %552 = vrot.lane.b32.xlu0 %v550, 127
    %v553 = vpop.permute.xlu0 %552
    %554 = vrot.lane.b32.xlu0 %v551, 127
    %v555 = vpop.permute.xlu0 %554
    %556 = vrot.lane.b32.xlu0 %v550, 1
    %v557 = vpop.permute.xlu0 %556
    %558 = vrot.lane.b32.xlu0 %v551, 1
    %v559 = vpop.permute.xlu0 %558
    %vm560 = vmxor %vm453, %vm65
    %vm561 = vmxor %vm560, 1
    %v562 = vsel %vm65, %v553, %v557
    %v563 = vsel %vm65, %v555, %v559
    %v564 = vmin.f32 %v550, %v562
    %v565 = vmin.f32 %v551, %v563
    %v566 = vmax.f32 %v550, %v562
    %v567 = vmax.f32 %v551, %v563
    %v568 = vsel %vm561, %v564, %v566
    %v569 = vsel %vm561, %v565, %v567
    %v570 = vsub.f32 %v568, %v569
    %v571 = vmul.f32 %v570, %v570
    %572 = vadd.xlane.f32.xlu0 %v571
    %v573 = vpop.xlane.xlu0 %572
    %v574 = vrot.slane %v573, 4
    %v575 = vadd.f32 %v573, %v574
    %v576 = vrot.slane %v575, 2
    %v577 = vadd.f32 %v575, %v576
    %v578 = vrot.slane %v577, 1
    %v579 = vadd.f32 %v577, %v578
    %vm580 = vcmp.eq.s32.totalorder %v55, 0
    %v581 = vsel %vm580, %v579, 0.0
    %v582 = vmul.f32 %v581, 0.0078125
    %583 = vst [vmem:[#allocation2] sm:$0x1] %v582
    // Predicated region
    $region18: #{_sliced_ws_loss_batched.1} parent=1 // pred_check
      _
    $region19: #{_sliced_ws_loss_batched.1} parent=1 // pred_check_branch
      %585 = sbr.rel (0) target = $region21
    $region20: #{_sliced_ws_loss_batched.1} parent=1 // pred_region
      %s587 = ssub.s32 16, 16
      %588 = vsyncadd [#allocation3], %s587
      %s590 = sshll.u32 [#allocation2], 4
      %s591 = int_to_ptr.vmem [resolvable:$true] %s590
      %593 = dma.vmem_to_hbm [thread:$0]  %s591, 16, %s4, [#allocation3]
    $region21: #{_sliced_ws_loss_batched.1} parent=1 // pred_fallthru
      _
    // Predicated region
    $region22: #{_sliced_ws_loss_batched.1} parent=1 // pred_check
      _
    $region23: #{_sliced_ws_loss_batched.1} parent=1 // pred_check_branch
      %595 = sbr.rel (0) target = $region25
    $region24: #{_sliced_ws_loss_batched.1} parent=1 // pred_region
      %596 = dma.done [#allocation3], 16
    $region25: #{_sliced_ws_loss_batched.1} parent=1 // pred_fallthru
      _
    %597 = vsyncpa [#allocation3], 1

</llo_original>
